<compile_context>
chip_gen: v6e
topology: v6e:2x2x1
jax: 0.10.0
libtpu: 0.0.40
codegen_flags: <defaults>
</compile_context>

<pallas_src>
import numpy as np
import jax
import jax.numpy as jnp
from jax.experimental import pallas as pl
from jax.experimental.pallas import tpu as pltpu


def _make_kernel(H, Cin, Cout, K1, K2, G, Bt):
    R = Bt * H
    inv_n = 1.0 / float(H * (Cout // G))
    eps = 1e-5

    def kernel(xp_ref, w1_ref, b1_ref, g1w_ref, g1b_ref,
               w2_ref, b2_ref, g2w_ref, g2b_ref,
               wres_ref, bres_ref,
               gmat_ref, gmat_t_ref, bsum_ref, bexp_ref,
               out_ref):
        gmat = gmat_ref[...]       # [Cout, G]    channel -> group indicator
        gmat_t = gmat_t_ref[...]   # [G, Cout]
        bsum = bsum_ref[...]       # [2Bt, 2R]    row-block -> (batch, {h, h^2}) sum indicator
        bexp = bexp_ref[...]       # [R, Bt]      batch -> rows expansion indicator

        def gn_mish(h, gw, gb):
            # h: [R, Cout] f32.  GroupNorm over (H, Cout/G) per (batch, group), then Mish.
            st = jnp.concatenate([h, h * h], axis=0)                           # [2R, Cout]
            pg = jnp.dot(st, gmat, preferred_element_type=jnp.float32)         # [2R, G]
            ss = jnp.dot(bsum, pg, preferred_element_type=jnp.float32)         # [2Bt, G]
            mean_g = ss[:Bt] * inv_n                                           # [Bt, G]
            var_g = ss[Bt:] * inv_n - mean_g * mean_g                          # [Bt, G]
            mv = jnp.concatenate([mean_g, var_g], axis=0)                      # [2Bt, G]
            mvc = jnp.dot(mv, gmat_t, preferred_element_type=jnp.float32)      # [2Bt, Cout]
            mean_c = jnp.dot(bexp, mvc[:Bt], preferred_element_type=jnp.float32)  # [R, Cout]
            var_c = jnp.dot(bexp, mvc[Bt:], preferred_element_type=jnp.float32)   # [R, Cout]
            hn = (h - mean_c) * jax.lax.rsqrt(var_c + eps) * gw + gb
            # mish(x) = x * tanh(softplus(x)) = x * (1 - 2/((1+e^x)^2 + 1)); single exp,
            # clamp keeps the intermediate finite (result already == x for x > 30).
            e = jnp.exp(jnp.minimum(hn, 30.0))
            u = 1.0 + e
            return hn * (1.0 - 2.0 * pl.reciprocal(u * u + 1.0, approx=True))

        xp = xp_ref[...]                                                       # [Bt, H+K1-1, Cin]

        # ---- im2col slab for conv1 (shared with the 1x1 residual conv) ----
        wins = []
        for b in range(Bt):
            xb = xp[b]                                                         # [H+K1-1, Cin]
            wins.append(jnp.concatenate([xb[k:k + H, :] for k in range(K1)], axis=-1))
        x_win = jnp.concatenate(wins, axis=0).astype(jnp.bfloat16)             # [R, K1*Cin]

        # ---- block 0: causal conv -> GroupNorm -> Mish ----
        h1 = jnp.dot(x_win, w1_ref[...], preferred_element_type=jnp.float32) + b1_ref[...]
        h1 = gn_mish(h1, g1w_ref[...], g1b_ref[...])

        # ---- block 1: causal window built in registers (no VMEM scratch round trip) ----
        zpad = jnp.zeros((K2 - 1, Cout), jnp.float32) if K2 > 1 else None
        wins2 = []
        for b in range(Bt):
            hb = h1[b * H:(b + 1) * H, :]                                      # [H, Cout]
            hpb = jnp.concatenate([zpad, hb], axis=0) if K2 > 1 else hb        # [H+K2-1, Cout]
            wins2.append(jnp.concatenate([hpb[k:k + H, :] for k in range(K2)], axis=-1))
        h_win = jnp.concatenate(wins2, axis=0).astype(jnp.bfloat16)            # [R, K2*Cout]

        h2 = jnp.dot(h_win, w2_ref[...], preferred_element_type=jnp.float32) + b2_ref[...]
        h2 = gn_mish(h2, g2w_ref[...], g2b_ref[...])

        # ---- residual 1x1 conv: wres zero-padded host-side to [K1*Cin, Cout] so it
        #      consumes the same (aligned) im2col slab.
        res = jnp.dot(x_win, wres_ref[...], preferred_element_type=jnp.float32) + bres_ref[...]

        out_ref[...] = (h2 + res).astype(out_ref.dtype)

    return kernel


def residual_temporal_block(x, params, *, kernel_size=3, n_groups=8,
                            input_mask=None, batch_tile=None):
    """x: [B, H, Cin] float32 -> [B, H, Cout].  stride=1, pooling=1, causal=True."""
    B, H, Cin = x.shape
    K1 = kernel_size
    K2 = kernel_size                  # second_kernel_size == kernel_size because stride == 1
    w1 = params["w1"]                 # [K1, Cin, Cout]
    Cout = w1.shape[-1]
    G = n_groups
    assert Cout % G == 0

    if input_mask is not None:
        x = x * input_mask.reshape(B, H, 1)

    # ---- batch tiling: enough rows per grid step to fill the MXU and amortize
    #      the ~0.35us per-grid-step overhead.
    if batch_tile is None:
        batch_tile = max(1, min(B, pl.cdiv(128, H)))
    Bt = int(batch_tile)
    Bp = pl.cdiv(B, Bt) * Bt
    if Bp != B:
        x = jnp.concatenate([x, jnp.zeros((Bp - B, H, Cin), x.dtype)], axis=0)

    # causal left zero-padding for the first conv (glue)
    x_pad = jnp.concatenate([jnp.zeros((Bp, K1 - 1, Cin), x.dtype), x], axis=1)

    # ---- host-side weight prep: im2col-flattened, bf16 for the MXU
    w1f = w1.reshape(K1 * Cin, Cout).astype(jnp.bfloat16)
    w2f = params["w2"].reshape(K2 * Cout, Cout).astype(jnp.bfloat16)
    wresf = (jnp.zeros((K1 * Cin, Cout), jnp.float32)
             .at[(K1 - 1) * Cin:].set(params["wres"])).astype(jnp.bfloat16)

    # ---- tiny f32 indicator matrices (group stats / per-batch reduce & broadcast)
    R = Bt * H
    cg = Cout // G
    gmat = (jnp.arange(Cout)[:, None] // cg == jnp.arange(G)[None, :]).astype(jnp.float32)
    gmat_t = gmat.T
    bsum = (jnp.arange(2 * R)[None, :] // H == jnp.arange(2 * Bt)[:, None]).astype(jnp.float32)
    bexp = (jnp.arange(R)[:, None] // H == jnp.arange(Bt)[None, :]).astype(jnp.float32)

    kernel = _make_kernel(H, Cin, Cout, K1, K2, G, Bt)

    def full(shape):
        n = len(shape)
        return pl.BlockSpec(shape, lambda b, _n=n: (0,) * _n)

    grid_spec = pltpu.PrefetchScalarGridSpec(
        num_scalar_prefetch=0,
        grid=(Bp // Bt,),
        in_specs=[
            pl.BlockSpec((Bt, H + K1 - 1, Cin), lambda b: (b, 0, 0)),   # x_pad (batch tile)
            full((K1 * Cin, Cout)), full((1, Cout)),                    # w1, b1
            full((1, Cout)), full((1, Cout)),                           # gn1 w, b
            full((K2 * Cout, Cout)), full((1, Cout)),                   # w2, b2
            full((1, Cout)), full((1, Cout)),                           # gn2 w, b
            full((K1 * Cin, Cout)), full((1, Cout)),                    # residual 1x1 conv
            full((Cout, G)), full((G, Cout)),                           # group indicators
            full((2 * Bt, 2 * R)), full((R, Bt)),                       # batch indicators
        ],
        out_specs=pl.BlockSpec((R, Cout), lambda b: (b, 0)),            # 2D [Bt*H, Cout] slab
    )

    out = pl.pallas_call(
        kernel,
        out_shape=jax.ShapeDtypeStruct((Bp * H, Cout), jnp.float32),
        grid_spec=grid_spec,
        compiler_params=pltpu.CompilerParams(dimension_semantics=("parallel",)),
    )(x_pad, w1f, params["b1"], params["g1w"], params["g1b"],
      w2f, params["b2"], params["g2w"], params["g2b"],
      wresf, params["bres"], gmat, gmat_t, bsum, bexp)

    out = out.reshape(Bp, H, Cout)
    return out[:B] if Bp != B else out


# ----------------- pure-JAX reference (for correctness check) -----------------
def _ref_block(x, params, kernel_size=3, n_groups=8, eps=1e-5):
    x_bch = jnp.transpose(x, (0, 2, 1))  # [B, Cin, H]

    def causal_conv(inp, w_kio, b):
        w_oik = jnp.transpose(w_kio, (2, 1, 0))  # [O, I, K]
        K = w_oik.shape[-1]
        y = jax.lax.conv_general_dilated(
            inp, w_oik, window_strides=(1,), padding=[(K - 1, 0)],
            dimension_numbers=("NCH", "OIH", "NCH"))
        return y + b.reshape(1, -1, 1)

    def gn_mish(h, gw, gb):
        B_, C, H_ = h.shape
        hg = h.reshape(B_, n_groups, C // n_groups, H_)
        mean = hg.mean(axis=(2, 3), keepdims=True)
        var = hg.var(axis=(2, 3), keepdims=True)
        hn = ((hg - mean) / jnp.sqrt(var + eps)).reshape(B_, C, H_)
        hn = hn * gw.reshape(1, -1, 1) + gb.reshape(1, -1, 1)
        return hn * jnp.tanh(jax.nn.softplus(hn))

    h = gn_mish(causal_conv(x_bch, params["w1"], params["b1"][0]),
                params["g1w"][0], params["g1b"][0])
    h = gn_mish(causal_conv(h, params["w2"], params["b2"][0]),
                params["g2w"][0], params["g2b"][0])
    res = jnp.einsum("bih,io->boh", x_bch, params["wres"]) + params["bres"][0].reshape(1, -1, 1)
    return jnp.transpose(h + res, (0, 2, 1))


def init_params(key, Cin, Cout, K):
    ks = jax.random.split(key, 10)
    b1w = 1.0 / (Cin * K) ** 0.5
    b2w = 1.0 / (Cout * K) ** 0.5
    brw = 1.0 / Cin ** 0.5
    return dict(
        w1=jax.random.uniform(ks[0], (K, Cin, Cout), jnp.float32, -b1w, b1w),
        b1=jax.random.uniform(ks[1], (1, Cout), jnp.float32, -b1w, b1w),
        w2=jax.random.uniform(ks[2], (K, Cout, Cout), jnp.float32, -b2w, b2w),
        b2=jax.random.uniform(ks[3], (1, Cout), jnp.float32, -b2w, b2w),
        g1w=jax.random.uniform(ks[4], (1, Cout), jnp.float32, 0.5, 1.5),
        g1b=jax.random.uniform(ks[5], (1, Cout), jnp.float32, -0.1, 0.1),
        g2w=jax.random.uniform(ks[6], (1, Cout), jnp.float32, 0.5, 1.5),
        g2b=jax.random.uniform(ks[7], (1, Cout), jnp.float32, -0.1, 0.1),
        wres=jax.random.uniform(ks[8], (Cin, Cout), jnp.float32, -brw, brw),
        bres=jax.random.uniform(ks[9], (1, Cout), jnp.float32, -brw, brw),
    )


if __name__ == "__main__":
    key = jax.random.PRNGKey(0)
    kx, kp, kx2 = jax.random.split(key, 3)
    B, H, Cin, Cout, K = 2, 16, 4, 16, 3   # out_channels != inp_channels -> 1x1 residual conv
    x = jax.random.normal(kx, (B, H, Cin), jnp.float32)
    params = init_params(kp, Cin, Cout, K)

    out = residual_temporal_block(x, params, kernel_size=K, n_groups=8)
    out = jax.block_until_ready(out)
    assert out.shape == (B, H, Cout)
    ref = _ref_block(x, params, kernel_size=K, n_groups=8)
    np.testing.assert_allclose(np.asarray(out), np.asarray(ref), atol=5e-2, rtol=5e-2)

    # second config: odd batch + explicit batch tile -> exercises batch padding and grid > 1
    x2 = jax.random.normal(kx2, (5, H, Cin), jnp.float32)
    out2 = jax.block_until_ready(
        residual_temporal_block(x2, params, kernel_size=K, n_groups=8, batch_tile=2))
    ref2 = _ref_block(x2, params, kernel_size=K, n_groups=8)
    np.testing.assert_allclose(np.asarray(out2), np.asarray(ref2), atol=5e-2, rtol=5e-2)

    print("KERNEL_OK")
</pallas_src>

<mosaic_0001>
module attributes {stable_mosaic.version = 11 : i64} {
  func.func @kernel(%arg0: i32, %arg1: memref<2x18x4xf32, #tpu.memory_space<vmem>>, %arg2: memref<12x16xbf16, #tpu.memory_space<vmem>>, %arg3: memref<1x16xf32, #tpu.memory_space<vmem>>, %arg4: memref<1x16xf32, #tpu.memory_space<vmem>>, %arg5: memref<1x16xf32, #tpu.memory_space<vmem>>, %arg6: memref<48x16xbf16, #tpu.memory_space<vmem>>, %arg7: memref<1x16xf32, #tpu.memory_space<vmem>>, %arg8: memref<1x16xf32, #tpu.memory_space<vmem>>, %arg9: memref<1x16xf32, #tpu.memory_space<vmem>>, %arg10: memref<12x16xbf16, #tpu.memory_space<vmem>>, %arg11: memref<1x16xf32, #tpu.memory_space<vmem>>, %arg12: memref<16x8xf32, #tpu.memory_space<vmem>>, %arg13: memref<8x16xf32, #tpu.memory_space<vmem>>, %arg14: memref<4x64xf32, #tpu.memory_space<vmem>>, %arg15: memref<32x2xf32, #tpu.memory_space<vmem>>, %arg16: memref<32x16xf32, #tpu.memory_space<vmem>>) attributes {dimension_semantics = [#tpu.dimension_semantics<parallel>], iteration_bounds = array<i64: 1>, scalar_prefetch = 0 : i64, scratch_operands = 0 : i64, tpu.core_type = #tpu.core_type<tc>, window_params = [{transform_indices = @transform_0, window_bounds = array<i64: 2, 18, 4>}, {pipeline_mode = #tpu.pipeline_mode<synchronous>, transform_indices = @transform_1, window_bounds = array<i64: 12, 16>}, {pipeline_mode = #tpu.pipeline_mode<synchronous>, transform_indices = @transform_2, window_bounds = array<i64: 1, 16>}, {pipeline_mode = #tpu.pipeline_mode<synchronous>, transform_indices = @transform_3, window_bounds = array<i64: 1, 16>}, {pipeline_mode = #tpu.pipeline_mode<synchronous>, transform_indices = @transform_4, window_bounds = array<i64: 1, 16>}, {pipeline_mode = #tpu.pipeline_mode<synchronous>, transform_indices = @transform_5, window_bounds = array<i64: 48, 16>}, {pipeline_mode = #tpu.pipeline_mode<synchronous>, transform_indices = @transform_6, window_bounds = array<i64: 1, 16>}, {pipeline_mode = #tpu.pipeline_mode<synchronous>, transform_indices = @transform_7, window_bounds = array<i64: 1, 16>}, {pipeline_mode = #tpu.pipeline_mode<synchronous>, transform_indices = @transform_8, window_bounds = array<i64: 1, 16>}, {pipeline_mode = #tpu.pipeline_mode<synchronous>, transform_indices = @transform_9, window_bounds = array<i64: 12, 16>}, {pipeline_mode = #tpu.pipeline_mode<synchronous>, transform_indices = @transform_10, window_bounds = array<i64: 1, 16>}, {pipeline_mode = #tpu.pipeline_mode<synchronous>, transform_indices = @transform_11, window_bounds = array<i64: 16, 8>}, {pipeline_mode = #tpu.pipeline_mode<synchronous>, transform_indices = @transform_12, window_bounds = array<i64: 8, 16>}, {pipeline_mode = #tpu.pipeline_mode<synchronous>, transform_indices = @transform_13, window_bounds = array<i64: 4, 64>}, {pipeline_mode = #tpu.pipeline_mode<synchronous>, transform_indices = @transform_14, window_bounds = array<i64: 32, 2>}, {transform_indices = @transform_15, window_bounds = array<i64: 32, 16>}]} {
    %c0 = arith.constant 0 : index
    %c0_0 = arith.constant 0 : index
    %0 = vector.load %arg12[%c0, %c0_0] : memref<16x8xf32, #tpu.memory_space<vmem>>, vector<16x8xf32>
    %c0_1 = arith.constant 0 : index
    %c0_2 = arith.constant 0 : index
    %1 = vector.load %arg13[%c0_1, %c0_2] : memref<8x16xf32, #tpu.memory_space<vmem>>, vector<8x16xf32>
    %c0_3 = arith.constant 0 : index
    %c0_4 = arith.constant 0 : index
    %2 = vector.load %arg14[%c0_3, %c0_4] : memref<4x64xf32, #tpu.memory_space<vmem>>, vector<4x64xf32>
    %c0_5 = arith.constant 0 : index
    %c0_6 = arith.constant 0 : index
    %3 = vector.load %arg15[%c0_5, %c0_6] : memref<32x2xf32, #tpu.memory_space<vmem>>, vector<32x2xf32>
    %c0_7 = arith.constant 0 : index
    %c0_8 = arith.constant 0 : index
    %c0_9 = arith.constant 0 : index
    %4 = vector.load %arg1[%c0_7, %c0_8, %c0_9] : memref<2x18x4xf32, #tpu.memory_space<vmem>>, vector<2x18x4xf32>
    %5 = vector.extract_strided_slice %4 {offsets = [0, 0, 0], sizes = [1, 18, 4], strides = [1, 1, 1]} : vector<2x18x4xf32> to vector<1x18x4xf32>
    %6 = vector.shape_cast %5 : vector<1x18x4xf32> to vector<18x4xf32>
    %7 = vector.extract_strided_slice %6 {offsets = [0, 0], sizes = [16, 4], strides = [1, 1]} : vector<18x4xf32> to vector<16x4xf32>
    %8 = vector.extract_strided_slice %6 {offsets = [1, 0], sizes = [16, 4], strides = [1, 1]} : vector<18x4xf32> to vector<16x4xf32>
    %9 = vector.extract_strided_slice %6 {offsets = [2, 0], sizes = [16, 4], strides = [1, 1]} : vector<18x4xf32> to vector<16x4xf32>
    %10 = tpu.concatenate %7, %8, %9 in 1 : vector<16x4xf32>, vector<16x4xf32>, vector<16x4xf32> -> vector<16x12xf32>
    %11 = vector.extract_strided_slice %4 {offsets = [1, 0, 0], sizes = [1, 18, 4], strides = [1, 1, 1]} : vector<2x18x4xf32> to vector<1x18x4xf32>
    %12 = vector.shape_cast %11 : vector<1x18x4xf32> to vector<18x4xf32>
    %13 = vector.extract_strided_slice %12 {offsets = [0, 0], sizes = [16, 4], strides = [1, 1]} : vector<18x4xf32> to vector<16x4xf32>
    %14 = vector.extract_strided_slice %12 {offsets = [1, 0], sizes = [16, 4], strides = [1, 1]} : vector<18x4xf32> to vector<16x4xf32>
    %15 = vector.extract_strided_slice %12 {offsets = [2, 0], sizes = [16, 4], strides = [1, 1]} : vector<18x4xf32> to vector<16x4xf32>
    %16 = tpu.concatenate %13, %14, %15 in 1 : vector<16x4xf32>, vector<16x4xf32>, vector<16x4xf32> -> vector<16x12xf32>
    %17 = tpu.concatenate %10, %16 in 0 : vector<16x12xf32>, vector<16x12xf32> -> vector<32x12xf32>
    %18 = arith.truncf %17 : vector<32x12xf32> to vector<32x12xbf16>
    %c0_10 = arith.constant 0 : index
    %c0_11 = arith.constant 0 : index
    %19 = vector.load %arg2[%c0_10, %c0_11] : memref<12x16xbf16, #tpu.memory_space<vmem>>, vector<12x16xbf16>
    %cst = arith.constant dense<0.000000e+00> : vector<32x16xf32>
    %20 = tpu.matmul %18, %19, %cst {dimension_numbers = #tpu.dot_dimension_numbers<[1], [0], [0], [1], [0, 0, 1, 1], [], []>} : vector<32x12xbf16>, vector<12x16xbf16>, vector<32x16xf32> -> vector<32x16xf32>
    %c0_12 = arith.constant 0 : index
    %c0_13 = arith.constant 0 : index
    %21 = vector.load %arg3[%c0_12, %c0_13] : memref<1x16xf32, #tpu.memory_space<vmem>>, vector<1x16xf32>
    %22 = vector.broadcast %21 : vector<1x16xf32> to vector<32x16xf32>
    %23 = arith.addf %20, %22 : vector<32x16xf32>
    %c0_14 = arith.constant 0 : index
    %c0_15 = arith.constant 0 : index
    %24 = vector.load %arg4[%c0_14, %c0_15] : memref<1x16xf32, #tpu.memory_space<vmem>>, vector<1x16xf32>
    %c0_16 = arith.constant 0 : index
    %c0_17 = arith.constant 0 : index
    %25 = vector.load %arg5[%c0_16, %c0_17] : memref<1x16xf32, #tpu.memory_space<vmem>>, vector<1x16xf32>
    %26 = arith.mulf %23, %23 : vector<32x16xf32>
    %27 = tpu.concatenate %23, %26 in 0 : vector<32x16xf32>, vector<32x16xf32> -> vector<64x16xf32>
    %cst_18 = arith.constant dense<0.000000e+00> : vector<64x8xf32>
    %28 = tpu.matmul %27, %0, %cst_18 {dimension_numbers = #tpu.dot_dimension_numbers<[1], [0], [0], [1], [0, 0, 1, 1], [], []>} : vector<64x16xf32>, vector<16x8xf32>, vector<64x8xf32> -> vector<64x8xf32>
    %cst_19 = arith.constant dense<0.000000e+00> : vector<4x8xf32>
    %29 = tpu.matmul %2, %28, %cst_19 {dimension_numbers = #tpu.dot_dimension_numbers<[1], [0], [0], [1], [0, 0, 1, 1], [], []>} : vector<4x64xf32>, vector<64x8xf32>, vector<4x8xf32> -> vector<4x8xf32>
    %30 = vector.extract_strided_slice %29 {offsets = [0, 0], sizes = [2, 8], strides = [1, 1]} : vector<4x8xf32> to vector<2x8xf32>
    %cst_20 = arith.constant 3.125000e-02 : f32
    %31 = vector.broadcast %cst_20 : f32 to vector<2x8xf32>
    %32 = arith.mulf %30, %31 : vector<2x8xf32>
    %33 = vector.extract_strided_slice %29 {offsets = [2, 0], sizes = [2, 8], strides = [1, 1]} : vector<4x8xf32> to vector<2x8xf32>
    %cst_21 = arith.constant 3.125000e-02 : f32
    %34 = vector.broadcast %cst_21 : f32 to vector<2x8xf32>
    %35 = arith.mulf %33, %34 : vector<2x8xf32>
    %36 = arith.mulf %32, %32 : vector<2x8xf32>
    %37 = arith.subf %35, %36 : vector<2x8xf32>
    %38 = tpu.concatenate %32, %37 in 0 : vector<2x8xf32>, vector<2x8xf32> -> vector<4x8xf32>
    %cst_22 = arith.constant dense<0.000000e+00> : vector<4x16xf32>
    %39 = tpu.matmul %38, %1, %cst_22 {dimension_numbers = #tpu.dot_dimension_numbers<[1], [0], [0], [1], [0, 0, 1, 1], [], []>} : vector<4x8xf32>, vector<8x16xf32>, vector<4x16xf32> -> vector<4x16xf32>
    %40 = vector.extract_strided_slice %39 {offsets = [0, 0], sizes = [2, 16], strides = [1, 1]} : vector<4x16xf32> to vector<2x16xf32>
    %cst_23 = arith.constant dense<0.000000e+00> : vector<32x16xf32>
    %41 = tpu.matmul %3, %40, %cst_23 {dimension_numbers = #tpu.dot_dimension_numbers<[1], [0], [0], [1], [0, 0, 1, 1], [], []>} : vector<32x2xf32>, vector<2x16xf32>, vector<32x16xf32> -> vector<32x16xf32>
    %42 = vector.extract_strided_slice %39 {offsets = [2, 0], sizes = [2, 16], strides = [1, 1]} : vector<4x16xf32> to vector<2x16xf32>
    %cst_24 = arith.constant dense<0.000000e+00> : vector<32x16xf32>
    %43 = tpu.matmul %3, %42, %cst_24 {dimension_numbers = #tpu.dot_dimension_numbers<[1], [0], [0], [1], [0, 0, 1, 1], [], []>} : vector<32x2xf32>, vector<2x16xf32>, vector<32x16xf32> -> vector<32x16xf32>
    %44 = arith.subf %23, %41 : vector<32x16xf32>
    %cst_25 = arith.constant 9.99999974E-6 : f32
    %45 = vector.broadcast %cst_25 : f32 to vector<32x16xf32>
    %46 = arith.addf %43, %45 : vector<32x16xf32>
    %47 = math.rsqrt %46 : vector<32x16xf32>
    %48 = arith.mulf %44, %47 : vector<32x16xf32>
    %49 = vector.broadcast %24 : vector<1x16xf32> to vector<32x16xf32>
    %50 = arith.mulf %48, %49 : vector<32x16xf32>
    %51 = vector.broadcast %25 : vector<1x16xf32> to vector<32x16xf32>
    %52 = arith.addf %50, %51 : vector<32x16xf32>
    %cst_26 = arith.constant 3.000000e+01 : f32
    %53 = vector.broadcast %cst_26 : f32 to vector<32x16xf32>
    %54 = arith.minimumf %52, %53 : vector<32x16xf32>
    %55 = math.exp %54 : vector<32x16xf32>
    %cst_27 = arith.constant 1.000000e+00 : f32
    %56 = vector.broadcast %cst_27 : f32 to vector<32x16xf32>
    %57 = arith.addf %56, %55 : vector<32x16xf32>
    %58 = arith.mulf %57, %57 : vector<32x16xf32>
    %cst_28 = arith.constant 1.000000e+00 : f32
    %59 = vector.broadcast %cst_28 : f32 to vector<32x16xf32>
    %60 = arith.addf %58, %59 : vector<32x16xf32>
    %61 = tpu.reciprocal %60 {approx = true} : vector<32x16xf32> -> vector<32x16xf32>
    %cst_29 = arith.constant 2.000000e+00 : f32
    %62 = vector.broadcast %cst_29 : f32 to vector<32x16xf32>
    %63 = arith.mulf %62, %61 : vector<32x16xf32>
    %cst_30 = arith.constant 1.000000e+00 : f32
    %64 = vector.broadcast %cst_30 : f32 to vector<32x16xf32>
    %65 = arith.subf %64, %63 : vector<32x16xf32>
    %66 = arith.mulf %52, %65 : vector<32x16xf32>
    %cst_31 = arith.constant 0.000000e+00 : f32
    %67 = vector.broadcast %cst_31 : f32 to vector<2x16xf32>
    %68 = vector.extract_strided_slice %66 {offsets = [0, 0], sizes = [16, 16], strides = [1, 1]} : vector<32x16xf32> to vector<16x16xf32>
    %69 = tpu.concatenate %67, %68 in 0 : vector<2x16xf32>, vector<16x16xf32> -> vector<18x16xf32>
    %70 = vector.extract_strided_slice %69 {offsets = [0, 0], sizes = [16, 16], strides = [1, 1]} : vector<18x16xf32> to vector<16x16xf32>
    %71 = vector.extract_strided_slice %69 {offsets = [1, 0], sizes = [16, 16], strides = [1, 1]} : vector<18x16xf32> to vector<16x16xf32>
    %72 = vector.extract_strided_slice %69 {offsets = [2, 0], sizes = [16, 16], strides = [1, 1]} : vector<18x16xf32> to vector<16x16xf32>
    %73 = tpu.concatenate %70, %71, %72 in 1 : vector<16x16xf32>, vector<16x16xf32>, vector<16x16xf32> -> vector<16x48xf32>
    %74 = vector.extract_strided_slice %66 {offsets = [16, 0], sizes = [16, 16], strides = [1, 1]} : vector<32x16xf32> to vector<16x16xf32>
    %75 = tpu.concatenate %67, %74 in 0 : vector<2x16xf32>, vector<16x16xf32> -> vector<18x16xf32>
    %76 = vector.extract_strided_slice %75 {offsets = [0, 0], sizes = [16, 16], strides = [1, 1]} : vector<18x16xf32> to vector<16x16xf32>
    %77 = vector.extract_strided_slice %75 {offsets = [1, 0], sizes = [16, 16], strides = [1, 1]} : vector<18x16xf32> to vector<16x16xf32>
    %78 = vector.extract_strided_slice %75 {offsets = [2, 0], sizes = [16, 16], strides = [1, 1]} : vector<18x16xf32> to vector<16x16xf32>
    %79 = tpu.concatenate %76, %77, %78 in 1 : vector<16x16xf32>, vector<16x16xf32>, vector<16x16xf32> -> vector<16x48xf32>
    %80 = tpu.concatenate %73, %79 in 0 : vector<16x48xf32>, vector<16x48xf32> -> vector<32x48xf32>
    %81 = arith.truncf %80 : vector<32x48xf32> to vector<32x48xbf16>
    %c0_32 = arith.constant 0 : index
    %c0_33 = arith.constant 0 : index
    %82 = vector.load %arg6[%c0_32, %c0_33] : memref<48x16xbf16, #tpu.memory_space<vmem>>, vector<48x16xbf16>
    %cst_34 = arith.constant dense<0.000000e+00> : vector<32x16xf32>
    %83 = tpu.matmul %81, %82, %cst_34 {dimension_numbers = #tpu.dot_dimension_numbers<[1], [0], [0], [1], [0, 0, 1, 1], [], []>} : vector<32x48xbf16>, vector<48x16xbf16>, vector<32x16xf32> -> vector<32x16xf32>
    %c0_35 = arith.constant 0 : index
    %c0_36 = arith.constant 0 : index
    %84 = vector.load %arg7[%c0_35, %c0_36] : memref<1x16xf32, #tpu.memory_space<vmem>>, vector<1x16xf32>
    %85 = vector.broadcast %84 : vector<1x16xf32> to vector<32x16xf32>
    %86 = arith.addf %83, %85 : vector<32x16xf32>
    %c0_37 = arith.constant 0 : index
    %c0_38 = arith.constant 0 : index
    %87 = vector.load %arg8[%c0_37, %c0_38] : memref<1x16xf32, #tpu.memory_space<vmem>>, vector<1x16xf32>
    %c0_39 = arith.constant 0 : index
    %c0_40 = arith.constant 0 : index
    %88 = vector.load %arg9[%c0_39, %c0_40] : memref<1x16xf32, #tpu.memory_space<vmem>>, vector<1x16xf32>
    %89 = arith.mulf %86, %86 : vector<32x16xf32>
    %90 = tpu.concatenate %86, %89 in 0 : vector<32x16xf32>, vector<32x16xf32> -> vector<64x16xf32>
    %cst_41 = arith.constant dense<0.000000e+00> : vector<64x8xf32>
    %91 = tpu.matmul %90, %0, %cst_41 {dimension_numbers = #tpu.dot_dimension_numbers<[1], [0], [0], [1], [0, 0, 1, 1], [], []>} : vector<64x16xf32>, vector<16x8xf32>, vector<64x8xf32> -> vector<64x8xf32>
    %cst_42 = arith.constant dense<0.000000e+00> : vector<4x8xf32>
    %92 = tpu.matmul %2, %91, %cst_42 {dimension_numbers = #tpu.dot_dimension_numbers<[1], [0], [0], [1], [0, 0, 1, 1], [], []>} : vector<4x64xf32>, vector<64x8xf32>, vector<4x8xf32> -> vector<4x8xf32>
    %93 = vector.extract_strided_slice %92 {offsets = [0, 0], sizes = [2, 8], strides = [1, 1]} : vector<4x8xf32> to vector<2x8xf32>
    %cst_43 = arith.constant 3.125000e-02 : f32
    %94 = vector.broadcast %cst_43 : f32 to vector<2x8xf32>
    %95 = arith.mulf %93, %94 : vector<2x8xf32>
    %96 = vector.extract_strided_slice %92 {offsets = [2, 0], sizes = [2, 8], strides = [1, 1]} : vector<4x8xf32> to vector<2x8xf32>
    %cst_44 = arith.constant 3.125000e-02 : f32
    %97 = vector.broadcast %cst_44 : f32 to vector<2x8xf32>
    %98 = arith.mulf %96, %97 : vector<2x8xf32>
    %99 = arith.mulf %95, %95 : vector<2x8xf32>
    %100 = arith.subf %98, %99 : vector<2x8xf32>
    %101 = tpu.concatenate %95, %100 in 0 : vector<2x8xf32>, vector<2x8xf32> -> vector<4x8xf32>
    %cst_45 = arith.constant dense<0.000000e+00> : vector<4x16xf32>
    %102 = tpu.matmul %101, %1, %cst_45 {dimension_numbers = #tpu.dot_dimension_numbers<[1], [0], [0], [1], [0, 0, 1, 1], [], []>} : vector<4x8xf32>, vector<8x16xf32>, vector<4x16xf32> -> vector<4x16xf32>
    %103 = vector.extract_strided_slice %102 {offsets = [0, 0], sizes = [2, 16], strides = [1, 1]} : vector<4x16xf32> to vector<2x16xf32>
    %cst_46 = arith.constant dense<0.000000e+00> : vector<32x16xf32>
    %104 = tpu.matmul %3, %103, %cst_46 {dimension_numbers = #tpu.dot_dimension_numbers<[1], [0], [0], [1], [0, 0, 1, 1], [], []>} : vector<32x2xf32>, vector<2x16xf32>, vector<32x16xf32> -> vector<32x16xf32>
    %105 = vector.extract_strided_slice %102 {offsets = [2, 0], sizes = [2, 16], strides = [1, 1]} : vector<4x16xf32> to vector<2x16xf32>
    %cst_47 = arith.constant dense<0.000000e+00> : vector<32x16xf32>
    %106 = tpu.matmul %3, %105, %cst_47 {dimension_numbers = #tpu.dot_dimension_numbers<[1], [0], [0], [1], [0, 0, 1, 1], [], []>} : vector<32x2xf32>, vector<2x16xf32>, vector<32x16xf32> -> vector<32x16xf32>
    %107 = arith.subf %86, %104 : vector<32x16xf32>
    %cst_48 = arith.constant 9.99999974E-6 : f32
    %108 = vector.broadcast %cst_48 : f32 to vector<32x16xf32>
    %109 = arith.addf %106, %108 : vector<32x16xf32>
    %110 = math.rsqrt %109 : vector<32x16xf32>
    %111 = arith.mulf %107, %110 : vector<32x16xf32>
    %112 = vector.broadcast %87 : vector<1x16xf32> to vector<32x16xf32>
    %113 = arith.mulf %111, %112 : vector<32x16xf32>
    %114 = vector.broadcast %88 : vector<1x16xf32> to vector<32x16xf32>
    %115 = arith.addf %113, %114 : vector<32x16xf32>
    %cst_49 = arith.constant 3.000000e+01 : f32
    %116 = vector.broadcast %cst_49 : f32 to vector<32x16xf32>
    %117 = arith.minimumf %115, %116 : vector<32x16xf32>
    %118 = math.exp %117 : vector<32x16xf32>
    %cst_50 = arith.constant 1.000000e+00 : f32
    %119 = vector.broadcast %cst_50 : f32 to vector<32x16xf32>
    %120 = arith.addf %119, %118 : vector<32x16xf32>
    %121 = arith.mulf %120, %120 : vector<32x16xf32>
    %cst_51 = arith.constant 1.000000e+00 : f32
    %122 = vector.broadcast %cst_51 : f32 to vector<32x16xf32>
    %123 = arith.addf %121, %122 : vector<32x16xf32>
    %124 = tpu.reciprocal %123 {approx = true} : vector<32x16xf32> -> vector<32x16xf32>
    %cst_52 = arith.constant 2.000000e+00 : f32
    %125 = vector.broadcast %cst_52 : f32 to vector<32x16xf32>
    %126 = arith.mulf %125, %124 : vector<32x16xf32>
    %cst_53 = arith.constant 1.000000e+00 : f32
    %127 = vector.broadcast %cst_53 : f32 to vector<32x16xf32>
    %128 = arith.subf %127, %126 : vector<32x16xf32>
    %129 = arith.mulf %115, %128 : vector<32x16xf32>
    %c0_54 = arith.constant 0 : index
    %c0_55 = arith.constant 0 : index
    %130 = vector.load %arg10[%c0_54, %c0_55] : memref<12x16xbf16, #tpu.memory_space<vmem>>, vector<12x16xbf16>
    %cst_56 = arith.constant dense<0.000000e+00> : vector<32x16xf32>
    %131 = tpu.matmul %18, %130, %cst_56 {dimension_numbers = #tpu.dot_dimension_numbers<[1], [0], [0], [1], [0, 0, 1, 1], [], []>} : vector<32x12xbf16>, vector<12x16xbf16>, vector<32x16xf32> -> vector<32x16xf32>
    %c0_57 = arith.constant 0 : index
    %c0_58 = arith.constant 0 : index
    %132 = vector.load %arg11[%c0_57, %c0_58] : memref<1x16xf32, #tpu.memory_space<vmem>>, vector<1x16xf32>
    %133 = vector.broadcast %132 : vector<1x16xf32> to vector<32x16xf32>
    %134 = arith.addf %131, %133 : vector<32x16xf32>
    %135 = arith.addf %129, %134 : vector<32x16xf32>
    %c0_59 = arith.constant 0 : index
    %c0_60 = arith.constant 0 : index
    %136 = vector.load %arg16[%c0_59, %c0_60] : memref<32x16xf32, #tpu.memory_space<vmem>>, vector<32x16xf32>
    tpu.vector_store %arg16[%c0_59, %c0_60], %135 {strides = array<i32>} : memref<32x16xf32, #tpu.memory_space<vmem>>, vector<32x16xf32>,
    return
  }
  func.func @transform_0(%arg0: i32) -> (i32, i32, i32) {
    %c0_i32 = arith.constant 0 : i32
    %c0_i32_0 = arith.constant 0 : i32
    %c0_i32_1 = arith.constant 0 : i32
    return %arg0, %c0_i32, %c0_i32_0 : i32, i32, i32
  }
  func.func @transform_1(%arg0: i32) -> (i32, i32) {
    %c0_i32 = arith.constant 0 : i32
    %c0_i32_0 = arith.constant 0 : i32
    %c0_i32_1 = arith.constant 0 : i32
    return %c0_i32, %c0_i32_0 : i32, i32
  }
  func.func @transform_2(%arg0: i32) -> (i32, i32) {
    %c0_i32 = arith.constant 0 : i32
    %c0_i32_0 = arith.constant 0 : i32
    %c0_i32_1 = arith.constant 0 : i32
    return %c0_i32, %c0_i32_0 : i32, i32
  }
  func.func @transform_3(%arg0: i32) -> (i32, i32) {
    %c0_i32 = arith.constant 0 : i32
    %c0_i32_0 = arith.constant 0 : i32
    %c0_i32_1 = arith.constant 0 : i32
    return %c0_i32, %c0_i32_0 : i32, i32
  }
  func.func @transform_4(%arg0: i32) -> (i32, i32) {
    %c0_i32 = arith.constant 0 : i32
    %c0_i32_0 = arith.constant 0 : i32
    %c0_i32_1 = arith.constant 0 : i32
    return %c0_i32, %c0_i32_0 : i32, i32
  }
  func.func @transform_5(%arg0: i32) -> (i32, i32) {
    %c0_i32 = arith.constant 0 : i32
    %c0_i32_0 = arith.constant 0 : i32
    %c0_i32_1 = arith.constant 0 : i32
    return %c0_i32, %c0_i32_0 : i32, i32
  }
  func.func @transform_6(%arg0: i32) -> (i32, i32) {
    %c0_i32 = arith.constant 0 : i32
    %c0_i32_0 = arith.constant 0 : i32
    %c0_i32_1 = arith.constant 0 : i32
    return %c0_i32, %c0_i32_0 : i32, i32
  }
  func.func @transform_7(%arg0: i32) -> (i32, i32) {
    %c0_i32 = arith.constant 0 : i32
    %c0_i32_0 = arith.constant 0 : i32
    %c0_i32_1 = arith.constant 0 : i32
    return %c0_i32, %c0_i32_0 : i32, i32
  }
  func.func @transform_8(%arg0: i32) -> (i32, i32) {
    %c0_i32 = arith.constant 0 : i32
    %c0_i32_0 = arith.constant 0 : i32
    %c0_i32_1 = arith.constant 0 : i32
    return %c0_i32, %c0_i32_0 : i32, i32
  }
  func.func @transform_9(%arg0: i32) -> (i32, i32) {
    %c0_i32 = arith.constant 0 : i32
    %c0_i32_0 = arith.constant 0 : i32
    %c0_i32_1 = arith.constant 0 : i32
    return %c0_i32, %c0_i32_0 : i32, i32
  }
  func.func @transform_10(%arg0: i32) -> (i32, i32) {
    %c0_i32 = arith.constant 0 : i32
    %c0_i32_0 = arith.constant 0 : i32
    %c0_i32_1 = arith.constant 0 : i32
    return %c0_i32, %c0_i32_0 : i32, i32
  }
  func.func @transform_11(%arg0: i32) -> (i32, i32) {
    %c0_i32 = arith.constant 0 : i32
    %c0_i32_0 = arith.constant 0 : i32
    %c0_i32_1 = arith.constant 0 : i32
    return %c0_i32, %c0_i32_0 : i32, i32
  }
  func.func @transform_12(%arg0: i32) -> (i32, i32) {
    %c0_i32 = arith.constant 0 : i32
    %c0_i32_0 = arith.constant 0 : i32
    %c0_i32_1 = arith.constant 0 : i32
    return %c0_i32, %c0_i32_0 : i32, i32
  }
  func.func @transform_13(%arg0: i32) -> (i32, i32) {
    %c0_i32 = arith.constant 0 : i32
    %c0_i32_0 = arith.constant 0 : i32
    %c0_i32_1 = arith.constant 0 : i32
    return %c0_i32, %c0_i32_0 : i32, i32
  }
  func.func @transform_14(%arg0: i32) -> (i32, i32) {
    %c0_i32 = arith.constant 0 : i32
    %c0_i32_0 = arith.constant 0 : i32
    %c0_i32_1 = arith.constant 0 : i32
    return %c0_i32, %c0_i32_0 : i32, i32
  }
  func.func @transform_15(%arg0: i32) -> (i32, i32) {
    %c0_i32 = arith.constant 0 : i32
    %c0_i32_0 = arith.constant 0 : i32
    return %arg0, %c0_i32 : i32, i32
  }
}

</mosaic_0001>

<llo_original>
// kernel: tpu_custom_call.1
$region0: #{tpu_custom_call.1}
  #allocation0 [shape = 'u32[]', space=smem, size = 0x4, offset = 0x4, fixed_abs, tag = 'smem constant byte address 0x4 - core index']
  #allocation1 [shape = 'u32[144,128]{1,0:T(1,128)}', space=vmem, size = 0x12000, scoped, tag = 'internal scratch']
  %s0 = inlined_call_operand.vmem [shape: f32[2,18,4], index: 0, kind: input, shape index: {}]
  %s1 = inlined_call_operand.vmem [shape: bf16[12,16], index: 1, kind: input, shape index: {}]
  %s2 = inlined_call_operand.vmem [shape: f32[1,16], index: 2, kind: input, shape index: {}]
  %s3 = inlined_call_operand.vmem [shape: f32[1,16], index: 3, kind: input, shape index: {}]
  %s4 = inlined_call_operand.vmem [shape: f32[1,16], index: 4, kind: input, shape index: {}]
  %s5 = inlined_call_operand.vmem [shape: bf16[48,16], index: 5, kind: input, shape index: {}]
  %s6 = inlined_call_operand.vmem [shape: f32[1,16], index: 6, kind: input, shape index: {}]
  %s7 = inlined_call_operand.vmem [shape: f32[1,16], index: 7, kind: input, shape index: {}]
  %s8 = inlined_call_operand.vmem [shape: f32[1,16], index: 8, kind: input, shape index: {}]
  %s9 = inlined_call_operand.vmem [shape: bf16[12,16], index: 9, kind: input, shape index: {}]
  %s10 = inlined_call_operand.vmem [shape: f32[1,16], index: 10, kind: input, shape index: {}]
  %s11 = inlined_call_operand.vmem [shape: f32[16,8], index: 11, kind: input, shape index: {}]
  %s12 = inlined_call_operand.vmem [shape: f32[8,16], index: 12, kind: input, shape index: {}]
  %s13 = inlined_call_operand.vmem [shape: f32[4,64], index: 13, kind: input, shape index: {}]
  %s14 = inlined_call_operand.vmem [shape: f32[32,2], index: 14, kind: input, shape index: {}]
  %s15 = inlined_call_operand.vmem [shape: f32[32,16], index: 15, kind: output, shape index: {}]
  %s16 = sld [smem:[#allocation0]]
  $region70: #{tpu_custom_call.1} parent=0
    _
  %s18 = ssub.s32 1, %s16
  %s19 = scalar_select 0, %s18, %s16
  // Predicated region
  $region2: #{tpu_custom_call.1} parent=0 // pred_check
    _
  $region3: #{tpu_custom_call.1} parent=0 // pred_check_branch
    %21 = sbr.rel (0) target = $region5
  $region4: #{tpu_custom_call.1} parent=0 // pred_region
    _
  $region5: #{tpu_custom_call.1} parent=0 // pred_fallthru
    _
  // Predicated region
  $region6: #{tpu_custom_call.1} parent=0 // pred_check
    _
  $region7: #{tpu_custom_call.1} parent=0 // pred_check_branch
    %23 = sbr.rel (0) target = $region9
  $region8: #{tpu_custom_call.1} parent=0 // pred_region
    _
  $region9: #{tpu_custom_call.1} parent=0 // pred_fallthru
    _
  // Predicated region
  $region10: #{tpu_custom_call.1} parent=0 // pred_check
    _
  $region11: #{tpu_custom_call.1} parent=0 // pred_check_branch
    %25 = sbr.rel (0) target = $region13
  $region12: #{tpu_custom_call.1} parent=0 // pred_region
    _
  $region13: #{tpu_custom_call.1} parent=0 // pred_fallthru
    _
  // Predicated region
  $region14: #{tpu_custom_call.1} parent=0 // pred_check
    _
  $region15: #{tpu_custom_call.1} parent=0 // pred_check_branch
    %27 = sbr.rel (0) target = $region17
  $region16: #{tpu_custom_call.1} parent=0 // pred_region
    _
  $region17: #{tpu_custom_call.1} parent=0 // pred_fallthru
    _
  // Predicated region
  $region18: #{tpu_custom_call.1} parent=0 // pred_check
    _
  $region19: #{tpu_custom_call.1} parent=0 // pred_check_branch
    %29 = sbr.rel (0) target = $region21
  $region20: #{tpu_custom_call.1} parent=0 // pred_region
    _
  $region21: #{tpu_custom_call.1} parent=0 // pred_fallthru
    _
  // Predicated region
  $region22: #{tpu_custom_call.1} parent=0 // pred_check
    _
  $region23: #{tpu_custom_call.1} parent=0 // pred_check_branch
    %31 = sbr.rel (0) target = $region25
  $region24: #{tpu_custom_call.1} parent=0 // pred_region
    _
  $region25: #{tpu_custom_call.1} parent=0 // pred_fallthru
    _
  // Predicated region
  $region26: #{tpu_custom_call.1} parent=0 // pred_check
    _
  $region27: #{tpu_custom_call.1} parent=0 // pred_check_branch
    %33 = sbr.rel (0) target = $region29
  $region28: #{tpu_custom_call.1} parent=0 // pred_region
    _
  $region29: #{tpu_custom_call.1} parent=0 // pred_fallthru
    _
  // Predicated region
  $region30: #{tpu_custom_call.1} parent=0 // pred_check
    _
  $region31: #{tpu_custom_call.1} parent=0 // pred_check_branch
    %35 = sbr.rel (0) target = $region33
  $region32: #{tpu_custom_call.1} parent=0 // pred_region
    _
  $region33: #{tpu_custom_call.1} parent=0 // pred_fallthru
    _
  // Predicated region
  $region34: #{tpu_custom_call.1} parent=0 // pred_check
    _
  $region35: #{tpu_custom_call.1} parent=0 // pred_check_branch
    %37 = sbr.rel (0) target = $region37
  $region36: #{tpu_custom_call.1} parent=0 // pred_region
    _
  $region37: #{tpu_custom_call.1} parent=0 // pred_fallthru
    _
  // Predicated region
  $region38: #{tpu_custom_call.1} parent=0 // pred_check
    _
  $region39: #{tpu_custom_call.1} parent=0 // pred_check_branch
    %39 = sbr.rel (0) target = $region41
  $region40: #{tpu_custom_call.1} parent=0 // pred_region
    _
  $region41: #{tpu_custom_call.1} parent=0 // pred_fallthru
    _
  // Predicated region
  $region42: #{tpu_custom_call.1} parent=0 // pred_check
    _
  $region43: #{tpu_custom_call.1} parent=0 // pred_check_branch
    %41 = sbr.rel (0) target = $region45
  $region44: #{tpu_custom_call.1} parent=0 // pred_region
    _
  $region45: #{tpu_custom_call.1} parent=0 // pred_fallthru
    _
  // Predicated region
  $region46: #{tpu_custom_call.1} parent=0 // pred_check
    _
  $region47: #{tpu_custom_call.1} parent=0 // pred_check_branch
    %43 = sbr.rel (0) target = $region49
  $region48: #{tpu_custom_call.1} parent=0 // pred_region
    _
  $region49: #{tpu_custom_call.1} parent=0 // pred_fallthru
    _
  // Predicated region
  $region50: #{tpu_custom_call.1} parent=0 // pred_check
    _
  $region51: #{tpu_custom_call.1} parent=0 // pred_check_branch
    %45 = sbr.rel (0) target = $region53
  $region52: #{tpu_custom_call.1} parent=0 // pred_region
    _
  $region53: #{tpu_custom_call.1} parent=0 // pred_fallthru
    _
  // Predicated region
  $region54: #{tpu_custom_call.1} parent=0 // pred_check
    _
  $region55: #{tpu_custom_call.1} parent=0 // pred_check_branch
    %47 = sbr.rel (0) target = $region57
  $region56: #{tpu_custom_call.1} parent=0 // pred_region
    _
  $region57: #{tpu_custom_call.1} parent=0 // pred_fallthru
    _
  // Predicated region
  $region58: #{tpu_custom_call.1} parent=0 // pred_check
    _
  $region59: #{tpu_custom_call.1} parent=0 // pred_check_branch
    %49 = sbr.rel (0) target = $region61
  $region60: #{tpu_custom_call.1} parent=0 // pred_region
    _
  $region61: #{tpu_custom_call.1} parent=0 // pred_fallthru
    _
  %v51 = vld [vmem:[%s11] sm:$0xff]
  %v52 = vld [vmem:[%s11 + $0x8] sm:$0xff]
  %v53 = vld [vmem:[%s12] sm:$0xff]
  %v54 = vld [vmem:[%s13] sm:$0xf]
  %v55 = vld [vmem:[%s14] sm:$0xff]
  %v56 = vld [vmem:[%s14 + $0x8] sm:$0xff]
  %v57 = vld [vmem:[%s14 + $0x10] sm:$0xff]
  %v58 = vld [vmem:[%s14 + $0x18] sm:$0xff]
  %v59 = vld [vmem:[%s0] sm:$0xff]
  %v60 = vld [vmem:[%s0 + $0x8] sm:$0xff]
  %v61 = vld [vmem:[%s0 + $0x10] sm:$0x3]
  %v62 = vld [vmem:[%s0 + $0x18] sm:$0xff]
  %v63 = vld [vmem:[%s0 + $0x20] sm:$0xff]
  %v64 = vld [vmem:[%s0 + $0x28] sm:$0x3]
  %vm68 = vcmask 1046528
  %v69 = vrot.slane %v59, 1
  %v70 = vrot.slane %v60, 1
  %v71 = vsel %vm68, %v69, %v70
  %v72 = vrot.slane %v61, 1
  %v73 = vsel %vm68, %v70, %v72
  %74 = vrot.lane.b32.xlu0 %v71, 4
  %v75 = vpop.permute.xlu0 %74
  %76 = vrot.lane.b32.xlu0 %v73, 4
  %v77 = vpop.permute.xlu0 %76
  %vm80 = vcmask 1045504
  %v81 = vrot.slane %v59, 2
  %v82 = vrot.slane %v60, 2
  %v83 = vsel %vm80, %v81, %v82
  %v84 = vrot.slane %v61, 2
  %v85 = vsel %vm80, %v82, %v84
  %86 = vrot.lane.b32.xlu0 %v83, 8
  %v87 = vpop.permute.xlu0 %86
  %88 = vrot.lane.b32.xlu0 %v85, 8
  %v89 = vpop.permute.xlu0 %88
  %vm92 = vcmask 31744
  %v93 = vsel %vm92, %v59, %v75
  %v94 = vsel %vm92, %v60, %v77
  %vm95 = vcmask 64512
  %v96 = vsel %vm95, %v93, %v87
  %v97 = vsel %vm95, %v94, %v89
  %v101 = vrot.slane %v62, 1
  %v102 = vrot.slane %v63, 1
  %v103 = vsel %vm68, %v101, %v102
  %v104 = vrot.slane %v64, 1
  %v105 = vsel %vm68, %v102, %v104
  %106 = vrot.lane.b32.xlu0 %v103, 4
  %v107 = vpop.permute.xlu0 %106
  %108 = vrot.lane.b32.xlu0 %v105, 4
  %v109 = vpop.permute.xlu0 %108
  %v112 = vrot.slane %v62, 2
  %v113 = vrot.slane %v63, 2
  %v114 = vsel %vm80, %v112, %v113
  %v115 = vrot.slane %v64, 2
  %v116 = vsel %vm80, %v113, %v115
  %117 = vrot.lane.b32.xlu0 %v114, 8
  %v118 = vpop.permute.xlu0 %117
  %119 = vrot.lane.b32.xlu0 %v116, 8
  %v120 = vpop.permute.xlu0 %119
  %v123 = vsel %vm92, %v62, %v107
  %v124 = vsel %vm92, %v63, %v109
  %v125 = vsel %vm95, %v123, %v118
  %v126 = vsel %vm95, %v124, %v120
  %v127 = vpack.c.bf16 %v97, %v96
  %v128 = vpack.c.bf16 %v126, %v125
  %v129 = vld [vmem:[%s1] sm:$0xf]
  %v130 = vld [vmem:[%s1 + $0x4] sm:$0x3]
  %v131 = vld [vmem:[%s2] sm:$0x1]
  %v133 = vlaneseq
  %v134 = vshrl.u32 %v133, 7
  %v135 = vsub.s32 0, %v134
  %v136 = vrot.slane %v131, %v135
  %v140 = vunpack.c.l.b16 %v129
  %v141 = vunpack.c.l.b16 %v130
  %v142 = vpack.c.b16 %v141, %v140
  %vm143 = vcmask 97280
  %v145 = vsel %vm143, %v127, 0
  %v148 = vsel %vm143, %v128, 0
  %v151 = vsel %vm80, %v142, 0
  %153 = vmatprep.subr.bf16.mxu0 0
  %154 = vmatpush1.bf16.msra.mxu0 0
  %155 = vmatprep.subr.bf16.mxu0 0
  %156 = vmatpush1.bf16.msra.mxu0 0
  %157 = vmatprep.subr.bf16.mxu0 0
  %158 = vmatpush1.bf16.msra.mxu0 0
  %159 = vmatprep.subr.bf16.mxu0 0
  %160 = vmatpush1.bf16.msra.mxu0 0
  %161 = vmatprep.subr.bf16.mxu0 0
  %162 = vmatpush1.bf16.msra.mxu0 0
  %163 = vmatprep.subr.bf16.mxu0 0
  %164 = vmatpush1.bf16.msra.mxu0 0
  %165 = vmatprep.subr.bf16.mxu0 0
  %166 = vmatpush1.bf16.msra.mxu0 0
  %167 = vmatprep.subr.bf16.mxu0 0
  %168 = vmatpush1.bf16.msra.mxu0 %v151
  %169 = vmatprep.subr.bf16.mxu0 0
  %170 = vmatpush2.bf16.msra.mxu0 0
  %171 = vmatprep.subr.bf16.mxu0 0
  %172 = vmatpush2.bf16.msra.mxu0 0
  %173 = vmatprep.subr.bf16.mxu0 0
  %174 = vmatpush2.bf16.msra.mxu0 0
  %175 = vmatprep.subr.bf16.mxu0 0
  %176 = vmatpush2.bf16.msra.mxu0 0
  %177 = vmatprep.subr.bf16.mxu0 0
  %178 = vmatpush2.bf16.msra.mxu0 0
  %179 = vmatprep.subr.bf16.mxu0 0
  %180 = vmatpush2.bf16.msra.mxu0 0
  %181 = vmatprep.subr.bf16.mxu0 0
  %182 = vmatpush2.bf16.msra.mxu0 0
  %183 = vmatprep.subr.bf16.mxu0 0
  %184 = vmatpush2.bf16.msra.mxu0 0
  %185 = vmatprep.mubr.bf16.mxu0 0
  %186 = vmatmul.mubr.bf16.gmra.mxu0 %v145
  %v187 = vpop.f32.mrf.mxu0
  %v188 = vadd.f32 %v136, %v187
  %v189 = vpop.f32.mrf.mxu0
  %v190 = vpop.f32.mrf.mxu0
  %v191 = vadd.f32 %v136, %v190
  %v192 = vpop.f32.mrf.mxu0
  %193 = vmatprep.mubr.bf16.mxu0 0
  %194 = vmatmul.mubr.bf16.gmra.mxu0 %v148
  %v195 = vpop.f32.mrf.mxu0
  %v196 = vadd.f32 %v136, %v195
  %v197 = vpop.f32.mrf.mxu0
  %v198 = vpop.f32.mrf.mxu0
  %v199 = vadd.f32 %v136, %v198
  %v200 = vpop.f32.mrf.mxu0
  %201 = vdwg.mxu0
  %v202 = vld [vmem:[%s3] sm:$0x1]
  %v203 = vld [vmem:[%s4] sm:$0x1]
  %v204 = vmul.f32 %v188, %v188
  %v205 = vmul.f32 %v191, %v191
  %v206 = vmul.f32 %v196, %v196
  %v207 = vmul.f32 %v199, %v199
  %vm208 = vcmask 130048
  %v210 = vsel %vm208, %v188, 0
  %v213 = vsel %vm208, %v191, 0
  %v216 = vsel %vm208, %v196, 0
  %v219 = vsel %vm208, %v199, 0
  %v222 = vsel %vm208, %v204, 0
  %v225 = vsel %vm208, %v205, 0
  %v228 = vsel %vm208, %v206, 0
  %v231 = vsel %vm208, %v207, 0
  %233 = vmatprep.subr.mxu0 0.0
  %234 = vmatpush1.msra.mxu0 0.0
  %235 = vmatprep.subr.mxu0 0.0
  %236 = vmatpush1.msra.mxu0 0.0
  %237 = vmatprep.subr.mxu0 0.0
  %238 = vmatpush1.msra.mxu0 0.0
  %239 = vmatprep.subr.mxu0 0.0
  %240 = vmatpush1.msra.mxu0 0.0
  %241 = vmatprep.subr.mxu0 0.0
  %242 = vmatpush1.msra.mxu0 0.0
  %243 = vmatprep.subr.mxu0 0.0
  %244 = vmatpush1.msra.mxu0 0.0
  %245 = vmatprep.subr.mxu0 0.0
  %246 = vmatpush1.msra.mxu0 0.0
  %247 = vmatprep.subr.mxu0 0.0
  %248 = vmatpush1.msra.mxu0 0.0
  %249 = vmatprep.subr.mxu0 0.0
  %250 = vmatpush1.msra.mxu0 0.0
  %251 = vmatprep.subr.mxu0 0.0
  %252 = vmatpush1.msra.mxu0 0.0
  %253 = vmatprep.subr.mxu0 0.0
  %254 = vmatpush1.msra.mxu0 0.0
  %255 = vmatprep.subr.mxu0 0.0
  %256 = vmatpush1.msra.mxu0 0.0
  %257 = vmatprep.subr.mxu0 0.0
  %258 = vmatpush1.msra.mxu0 0.0
  %259 = vmatprep.subr.mxu0 0.0
  %260 = vmatpush1.msra.mxu0 0.0
  %261 = vmatprep.subr.mxu0 0.0
  %262 = vmatpush1.msra.mxu0 %v52
  %263 = vmatprep.subr.mxu0 0.0
  %264 = vmatpush1.msra.mxu0 %v51
  %265 = vmatprep.subr.mxu0 0.0
  %266 = vmatpush2.msra.mxu0 0.0
  %267 = vmatprep.subr.mxu0 0.0
  %268 = vmatpush2.msra.mxu0 0.0
  %269 = vmatprep.subr.mxu0 0.0
  %270 = vmatpush2.msra.mxu0 0.0
  %271 = vmatprep.subr.mxu0 0.0
  %272 = vmatpush2.msra.mxu0 0.0
  %273 = vmatprep.subr.mxu0 0.0
  %274 = vmatpush2.msra.mxu0 0.0
  %275 = vmatprep.subr.mxu0 0.0
  %276 = vmatpush2.msra.mxu0 0.0
  %277 = vmatprep.subr.mxu0 0.0
  %278 = vmatpush2.msra.mxu0 0.0
  %279 = vmatprep.subr.mxu0 0.0
  %280 = vmatpush2.msra.mxu0 0.0
  %281 = vmatprep.subr.mxu0 0.0
  %282 = vmatpush2.msra.mxu0 0.0
  %283 = vmatprep.subr.mxu0 0.0
  %284 = vmatpush2.msra.mxu0 0.0
  %285 = vmatprep.subr.mxu0 0.0
  %286 = vmatpush2.msra.mxu0 0.0
  %287 = vmatprep.subr.mxu0 0.0
  %288 = vmatpush2.msra.mxu0 0.0
  %289 = vmatprep.subr.mxu0 0.0
  %290 = vmatpush2.msra.mxu0 0.0
  %291 = vmatprep.subr.mxu0 0.0
  %292 = vmatpush2.msra.mxu0 0.0
  %293 = vmatprep.subr.mxu0 0.0
  %294 = vmatpush2.msra.mxu0 0.0
  %295 = vmatprep.subr.mxu0 0.0
  %296 = vmatpush2.msra.mxu0 0.0
  %297 = vmatprep.mubr.f32.mxu0 0.0
  %298 = vmatmul.mubr.f32.gmra.mxu0 %v210
  %v299 = vpop.f32.mrf.mxu0
  %v300 = vadd.f32 0.0, %v299
  %v301 = vpop.f32.mrf.mxu0
  %302 = vmatprep.mubr.f32.mxu0 0.0
  %303 = vmatmul.mubr.f32.gmra.mxu0 %v213
  %v304 = vpop.f32.mrf.mxu0
  %v305 = vadd.f32 0.0, %v304
  %v306 = vpop.f32.mrf.mxu0
  %307 = vmatprep.mubr.f32.mxu0 0.0
  %308 = vmatmul.mubr.f32.gmra.mxu0 %v216
  %v309 = vpop.f32.mrf.mxu0
  %v310 = vadd.f32 0.0, %v309
  %v311 = vpop.f32.mrf.mxu0
  %312 = vmatprep.mubr.f32.mxu0 0.0
  %313 = vmatmul.mubr.f32.gmra.mxu0 %v219
  %v314 = vpop.f32.mrf.mxu0
  %v315 = vadd.f32 0.0, %v314
  %v316 = vpop.f32.mrf.mxu0
  %317 = vmatprep.mubr.f32.mxu0 0.0
  %318 = vmatmul.mubr.f32.gmra.mxu0 %v222
  %v319 = vpop.f32.mrf.mxu0
  %v320 = vadd.f32 0.0, %v319
  %v321 = vpop.f32.mrf.mxu0
  %322 = vmatprep.mubr.f32.mxu0 0.0
  %323 = vmatmul.mubr.f32.gmra.mxu0 %v225
  %v324 = vpop.f32.mrf.mxu0
  %v325 = vadd.f32 0.0, %v324
  %v326 = vpop.f32.mrf.mxu0
  %327 = vmatprep.mubr.f32.mxu0 0.0
  %328 = vmatmul.mubr.f32.gmra.mxu0 %v228
  %v329 = vpop.f32.mrf.mxu0
  %v330 = vadd.f32 0.0, %v329
  %v331 = vpop.f32.mrf.mxu0
  %332 = vmatprep.mubr.f32.mxu0 0.0
  %333 = vmatmul.mubr.f32.gmra.mxu0 %v231
  %v334 = vpop.f32.mrf.mxu0
  %v335 = vadd.f32 0.0, %v334
  %v336 = vpop.f32.mrf.mxu0
  %337 = vdwg.mxu0
  %vm338 = vcmask 523264
  %v340 = vsel %vm338, %v54, 0
  %342 = vmatprep.subr.mxu0 0.0
  %343 = vmatpush1.msra.mxu0 0.0
  %344 = vmatprep.subr.mxu0 0.0
  %345 = vmatpush1.msra.mxu0 0.0
  %346 = vmatprep.subr.mxu0 0.0
  %347 = vmatpush1.msra.mxu0 0.0
  %348 = vmatprep.subr.mxu0 0.0
  %349 = vmatpush1.msra.mxu0 0.0
  %350 = vmatprep.subr.mxu0 0.0
  %351 = vmatpush1.msra.mxu0 0.0
  %352 = vmatprep.subr.mxu0 0.0
  %353 = vmatpush1.msra.mxu0 0.0
  %354 = vmatprep.subr.mxu0 0.0
  %355 = vmatpush1.msra.mxu0 0.0
  %356 = vmatprep.subr.mxu0 0.0
  %357 = vmatpush1.msra.mxu0 0.0
  %358 = vmatprep.subr.mxu0 0.0
  %359 = vmatpush1.msra.mxu0 %v335
  %360 = vmatprep.subr.mxu0 0.0
  %361 = vmatpush1.msra.mxu0 %v330
  %362 = vmatprep.subr.mxu0 0.0
  %363 = vmatpush1.msra.mxu0 %v325
  %364 = vmatprep.subr.mxu0 0.0
  %365 = vmatpush1.msra.mxu0 %v320
  %366 = vmatprep.subr.mxu0 0.0
  %367 = vmatpush1.msra.mxu0 %v315
  %368 = vmatprep.subr.mxu0 0.0
  %369 = vmatpush1.msra.mxu0 %v310
  %370 = vmatprep.subr.mxu0 0.0
  %371 = vmatpush1.msra.mxu0 %v305
  %372 = vmatprep.subr.mxu0 0.0
  %373 = vmatpush1.msra.mxu0 %v300
  %374 = vmatprep.subr.mxu0 0.0
  %375 = vmatpush2.msra.mxu0 0.0
  %376 = vmatprep.subr.mxu0 0.0
  %377 = vmatpush2.msra.mxu0 0.0
  %378 = vmatprep.subr.mxu0 0.0
  %379 = vmatpush2.msra.mxu0 0.0
  %380 = vmatprep.subr.mxu0 0.0
  %381 = vmatpush2.msra.mxu0 0.0
  %382 = vmatprep.subr.mxu0 0.0
  %383 = vmatpush2.msra.mxu0 0.0
  %384 = vmatprep.subr.mxu0 0.0
  %385 = vmatpush2.msra.mxu0 0.0
  %386 = vmatprep.subr.mxu0 0.0
  %387 = vmatpush2.msra.mxu0 0.0
  %388 = vmatprep.subr.mxu0 0.0
  %389 = vmatpush2.msra.mxu0 0.0
  %390 = vmatprep.subr.mxu0 0.0
  %391 = vmatpush2.msra.mxu0 0.0
  %392 = vmatprep.subr.mxu0 0.0
  %393 = vmatpush2.msra.mxu0 0.0
  %394 = vmatprep.subr.mxu0 0.0
  %395 = vmatpush2.msra.mxu0 0.0
  %396 = vmatprep.subr.mxu0 0.0
  %397 = vmatpush2.msra.mxu0 0.0
  %398 = vmatprep.subr.mxu0 0.0
  %399 = vmatpush2.msra.mxu0 0.0
  %400 = vmatprep.subr.mxu0 0.0
  %401 = vmatpush2.msra.mxu0 0.0
  %402 = vmatprep.subr.mxu0 0.0
  %403 = vmatpush2.msra.mxu0 0.0
  %404 = vmatprep.subr.mxu0 0.0
  %405 = vmatpush2.msra.mxu0 0.0
  %406 = vmatprep.mubr.f32.mxu0 0.0
  %407 = vmatmul.mubr.f32.gmra.mxu0 %v340
  %v408 = vpop.f32.mrf.mxu0
  %v409 = vadd.f32 0.0, %v408
  %v410 = vpop.f32.mrf.mxu0
  %411 = vdwg.mxu0
  %v412 = vmul.f32 %v409, 0.03125
  %v413 = vmul.f32 %v412, %v412
  %v415 = vrot.slane %v413, 6
  %v417 = vsub.f32 %v412, %v415
  %vm418 = vcmask 1041408
  %v419 = vsel %vm418, %v412, %v417
  %v421 = vsel %vm95, %v419, 0
  %423 = vmatprep.subr.mxu0 0.0
  %424 = vmatpush1.msra.mxu0 0.0
  %425 = vmatprep.subr.mxu0 0.0
  %426 = vmatpush1.msra.mxu0 0.0
  %427 = vmatprep.subr.mxu0 0.0
  %428 = vmatpush1.msra.mxu0 0.0
  %429 = vmatprep.subr.mxu0 0.0
  %430 = vmatpush1.msra.mxu0 0.0
  %431 = vmatprep.subr.mxu0 0.0
  %432 = vmatpush1.msra.mxu0 0.0
  %433 = vmatprep.subr.mxu0 0.0
  %434 = vmatpush1.msra.mxu0 0.0
  %435 = vmatprep.subr.mxu0 0.0
  %436 = vmatpush1.msra.mxu0 0.0
  %437 = vmatprep.subr.mxu0 0.0
  %438 = vmatpush1.msra.mxu0 0.0
  %439 = vmatprep.subr.mxu0 0.0
  %440 = vmatpush1.msra.mxu0 0.0
  %441 = vmatprep.subr.mxu0 0.0
  %442 = vmatpush1.msra.mxu0 0.0
  %443 = vmatprep.subr.mxu0 0.0
  %444 = vmatpush1.msra.mxu0 0.0
  %445 = vmatprep.subr.mxu0 0.0
  %446 = vmatpush1.msra.mxu0 0.0
  %447 = vmatprep.subr.mxu0 0.0
  %448 = vmatpush1.msra.mxu0 0.0
  %449 = vmatprep.subr.mxu0 0.0
  %450 = vmatpush1.msra.mxu0 0.0
  %451 = vmatprep.subr.mxu0 0.0
  %452 = vmatpush1.msra.mxu0 0.0
  %453 = vmatprep.subr.mxu0 0.0
  %454 = vmatpush1.msra.mxu0 %v53
  %455 = vmatprep.subr.mxu0 0.0
  %456 = vmatpush2.msra.mxu0 0.0
  %457 = vmatprep.subr.mxu0 0.0
  %458 = vmatpush2.msra.mxu0 0.0
  %459 = vmatprep.subr.mxu0 0.0
  %460 = vmatpush2.msra.mxu0 0.0
  %461 = vmatprep.subr.mxu0 0.0
  %462 = vmatpush2.msra.mxu0 0.0
  %463 = vmatprep.subr.mxu0 0.0
  %464 = vmatpush2.msra.mxu0 0.0
  %465 = vmatprep.subr.mxu0 0.0
  %466 = vmatpush2.msra.mxu0 0.0
  %467 = vmatprep.subr.mxu0 0.0
  %468 = vmatpush2.msra.mxu0 0.0
  %469 = vmatprep.subr.mxu0 0.0
  %470 = vmatpush2.msra.mxu0 0.0
  %471 = vmatprep.subr.mxu0 0.0
  %472 = vmatpush2.msra.mxu0 0.0
  %473 = vmatprep.subr.mxu0 0.0
  %474 = vmatpush2.msra.mxu0 0.0
  %475 = vmatprep.subr.mxu0 0.0
  %476 = vmatpush2.msra.mxu0 0.0
  %477 = vmatprep.subr.mxu0 0.0
  %478 = vmatpush2.msra.mxu0 0.0
  %479 = vmatprep.subr.mxu0 0.0
  %480 = vmatpush2.msra.mxu0 0.0
  %481 = vmatprep.subr.mxu0 0.0
  %482 = vmatpush2.msra.mxu0 0.0
  %483 = vmatprep.subr.mxu0 0.0
  %484 = vmatpush2.msra.mxu0 0.0
  %485 = vmatprep.subr.mxu0 0.0
  %486 = vmatpush2.msra.mxu0 0.0
  %487 = vmatprep.mubr.f32.mxu0 0.0
  %488 = vmatmul.mubr.f32.gmra.mxu0 %v421
  %v489 = vpop.f32.mrf.mxu0
  %v490 = vadd.f32 0.0, %v489
  %v491 = vpop.f32.mrf.mxu0
  %492 = vdwg.mxu0
  %vm493 = vcmask 15360
  %v495 = vsel %vm493, %v55, 0
  %v498 = vsel %vm493, %v56, 0
  %v501 = vsel %vm493, %v57, 0
  %v504 = vsel %vm493, %v58, 0
  %v507 = vsel %vm418, %v490, 0
  %509 = vmatprep.subr.mxu0 0.0
  %510 = vmatpush1.msra.mxu0 0.0
  %511 = vmatprep.subr.mxu0 0.0
  %512 = vmatpush1.msra.mxu0 0.0
  %513 = vmatprep.subr.mxu0 0.0
  %514 = vmatpush1.msra.mxu0 0.0
  %515 = vmatprep.subr.mxu0 0.0
  %516 = vmatpush1.msra.mxu0 0.0
  %517 = vmatprep.subr.mxu0 0.0
  %518 = vmatpush1.msra.mxu0 0.0
  %519 = vmatprep.subr.mxu0 0.0
  %520 = vmatpush1.msra.mxu0 0.0
  %521 = vmatprep.subr.mxu0 0.0
  %522 = vmatpush1.msra.mxu0 0.0
  %523 = vmatprep.subr.mxu0 0.0
  %524 = vmatpush1.msra.mxu0 0.0
  %525 = vmatprep.subr.mxu0 0.0
  %526 = vmatpush1.msra.mxu0 0.0
  %527 = vmatprep.subr.mxu0 0.0
  %528 = vmatpush1.msra.mxu0 0.0
  %529 = vmatprep.subr.mxu0 0.0
  %530 = vmatpush1.msra.mxu0 0.0
  %531 = vmatprep.subr.mxu0 0.0
  %532 = vmatpush1.msra.mxu0 0.0
  %533 = vmatprep.subr.mxu0 0.0
  %534 = vmatpush1.msra.mxu0 0.0
  %535 = vmatprep.subr.mxu0 0.0
  %536 = vmatpush1.msra.mxu0 0.0
  %537 = vmatprep.subr.mxu0 0.0
  %538 = vmatpush1.msra.mxu0 0.0
  %539 = vmatprep.subr.mxu0 0.0
  %540 = vmatpush1.msra.mxu0 %v507
  %541 = vmatprep.subr.mxu0 0.0
  %542 = vmatpush2.msra.mxu0 0.0
  %543 = vmatprep.subr.mxu0 0.0
  %544 = vmatpush2.msra.mxu0 0.0
  %545 = vmatprep.subr.mxu0 0.0
  %546 = vmatpush2.msra.mxu0 0.0
  %547 = vmatprep.subr.mxu0 0.0
  %548 = vmatpush2.msra.mxu0 0.0
  %549 = vmatprep.subr.mxu0 0.0
  %550 = vmatpush2.msra.mxu0 0.0
  %551 = vmatprep.subr.mxu0 0.0
  %552 = vmatpush2.msra.mxu0 0.0
  %553 = vmatprep.subr.mxu0 0.0
  %554 = vmatpush2.msra.mxu0 0.0
  %555 = vmatprep.subr.mxu0 0.0
  %556 = vmatpush2.msra.mxu0 0.0
  %557 = vmatprep.subr.mxu0 0.0
  %558 = vmatpush2.msra.mxu0 0.0
  %559 = vmatprep.subr.mxu0 0.0
  %560 = vmatpush2.msra.mxu0 0.0
  %561 = vmatprep.subr.mxu0 0.0
  %562 = vmatpush2.msra.mxu0 0.0
  %563 = vmatprep.subr.mxu0 0.0
  %564 = vmatpush2.msra.mxu0 0.0
  %565 = vmatprep.subr.mxu0 0.0
  %566 = vmatpush2.msra.mxu0 0.0
  %567 = vmatprep.subr.mxu0 0.0
  %568 = vmatpush2.msra.mxu0 0.0
  %569 = vmatprep.subr.mxu0 0.0
  %570 = vmatpush2.msra.mxu0 0.0
  %571 = vmatprep.subr.mxu0 0.0
  %572 = vmatpush2.msra.mxu0 0.0
  %573 = vmatprep.mubr.f32.mxu0 0.0
  %574 = vmatmul.mubr.f32.gmra.mxu0 %v495
  %v575 = vpop.f32.mrf.mxu0
  %v576 = vadd.f32 0.0, %v575
  %v577 = vpop.f32.mrf.mxu0
  %578 = vmatprep.mubr.f32.mxu0 0.0
  %579 = vmatmul.mubr.f32.gmra.mxu0 %v498
  %v580 = vpop.f32.mrf.mxu0
  %v581 = vadd.f32 0.0, %v580
  %v582 = vpop.f32.mrf.mxu0
  %583 = vmatprep.mubr.f32.mxu0 0.0
  %584 = vmatmul.mubr.f32.gmra.mxu0 %v501
  %v585 = vpop.f32.mrf.mxu0
  %v586 = vadd.f32 0.0, %v585
  %v587 = vpop.f32.mrf.mxu0
  %588 = vmatprep.mubr.f32.mxu0 0.0
  %589 = vmatmul.mubr.f32.gmra.mxu0 %v504
  %v590 = vpop.f32.mrf.mxu0
  %v591 = vadd.f32 0.0, %v590
  %v592 = vpop.f32.mrf.mxu0
  %593 = vdwg.mxu0
  %v594 = vsub.f32 %v188, %v576
  %v595 = vsub.f32 %v191, %v581
  %v596 = vsub.f32 %v196, %v586
  %v597 = vsub.f32 %v199, %v591
  %v598 = vrot.slane %v490, 2
  %v599 = vsel %vm418, %v598, 0
  %601 = vmatprep.subr.mxu0 0.0
  %602 = vmatpush1.msra.mxu0 0.0
  %603 = vmatprep.subr.mxu0 0.0
  %604 = vmatpush1.msra.mxu0 0.0
  %605 = vmatprep.subr.mxu0 0.0
  %606 = vmatpush1.msra.mxu0 0.0
  %607 = vmatprep.subr.mxu0 0.0
  %608 = vmatpush1.msra.mxu0 0.0
  %609 = vmatprep.subr.mxu0 0.0
  %610 = vmatpush1.msra.mxu0 0.0
  %611 = vmatprep.subr.mxu0 0.0
  %612 = vmatpush1.msra.mxu0 0.0
  %613 = vmatprep.subr.mxu0 0.0
  %614 = vmatpush1.msra.mxu0 0.0
  %615 = vmatprep.subr.mxu0 0.0
  %616 = vmatpush1.msra.mxu0 0.0
  %617 = vmatprep.subr.mxu0 0.0
  %618 = vmatpush1.msra.mxu0 0.0
  %619 = vmatprep.subr.mxu0 0.0
  %620 = vmatpush1.msra.mxu0 0.0
  %621 = vmatprep.subr.mxu0 0.0
  %622 = vmatpush1.msra.mxu0 0.0
  %623 = vmatprep.subr.mxu0 0.0
  %624 = vmatpush1.msra.mxu0 0.0
  %625 = vmatprep.subr.mxu0 0.0
  %626 = vmatpush1.msra.mxu0 0.0
  %627 = vmatprep.subr.mxu0 0.0
  %628 = vmatpush1.msra.mxu0 0.0
  %629 = vmatprep.subr.mxu0 0.0
  %630 = vmatpush1.msra.mxu0 0.0
  %631 = vmatprep.subr.mxu0 0.0
  %632 = vmatpush1.msra.mxu0 %v599
  %633 = vmatprep.subr.mxu0 0.0
  %634 = vmatpush2.msra.mxu0 0.0
  %635 = vmatprep.subr.mxu0 0.0
  %636 = vmatpush2.msra.mxu0 0.0
  %637 = vmatprep.subr.mxu0 0.0
  %638 = vmatpush2.msra.mxu0 0.0
  %639 = vmatprep.subr.mxu0 0.0
  %640 = vmatpush2.msra.mxu0 0.0
  %641 = vmatprep.subr.mxu0 0.0
  %642 = vmatpush2.msra.mxu0 0.0
  %643 = vmatprep.subr.mxu0 0.0
  %644 = vmatpush2.msra.mxu0 0.0
  %645 = vmatprep.subr.mxu0 0.0
  %646 = vmatpush2.msra.mxu0 0.0
  %647 = vmatprep.subr.mxu0 0.0
  %648 = vmatpush2.msra.mxu0 0.0
  %649 = vmatprep.subr.mxu0 0.0
  %650 = vmatpush2.msra.mxu0 0.0
  %651 = vmatprep.subr.mxu0 0.0
  %652 = vmatpush2.msra.mxu0 0.0
  %653 = vmatprep.subr.mxu0 0.0
  %654 = vmatpush2.msra.mxu0 0.0
  %655 = vmatprep.subr.mxu0 0.0
  %656 = vmatpush2.msra.mxu0 0.0
  %657 = vmatprep.subr.mxu0 0.0
  %658 = vmatpush2.msra.mxu0 0.0
  %659 = vmatprep.subr.mxu0 0.0
  %660 = vmatpush2.msra.mxu0 0.0
  %661 = vmatprep.subr.mxu0 0.0
  %662 = vmatpush2.msra.mxu0 0.0
  %663 = vmatprep.subr.mxu0 0.0
  %664 = vmatpush2.msra.mxu0 0.0
  %665 = vmatprep.mubr.f32.mxu0 0.0
  %666 = vmatmul.mubr.f32.gmra.mxu0 %v495
  %v667 = vpop.f32.mrf.mxu0
  %v668 = vadd.f32 1e-05, %v667
  %v669 = vpop.f32.mrf.mxu0
  %670 = vmatprep.mubr.f32.mxu0 0.0
  %671 = vmatmul.mubr.f32.gmra.mxu0 %v498
  %v672 = vpop.f32.mrf.mxu0
  %v673 = vadd.f32 1e-05, %v672
  %v674 = vpop.f32.mrf.mxu0
  %675 = vmatprep.mubr.f32.mxu0 0.0
  %676 = vmatmul.mubr.f32.gmra.mxu0 %v501
  %v677 = vpop.f32.mrf.mxu0
  %v678 = vadd.f32 1e-05, %v677
  %v679 = vpop.f32.mrf.mxu0
  %680 = vmatprep.mubr.f32.mxu0 0.0
  %681 = vmatmul.mubr.f32.gmra.mxu0 %v504
  %v682 = vpop.f32.mrf.mxu0
  %v683 = vadd.f32 1e-05, %v682
  %v684 = vpop.f32.mrf.mxu0
  %685 = vdwg.mxu0
  %v686 = vrsqrt.pop %v668
  %v687 = vrsqrt.pop %v673
  %v688 = vrsqrt.pop %v678
  %v689 = vrsqrt.pop %v683
  %v690 = vmul.f32 %v594, %v686
  %v691 = vmul.f32 %v595, %v687
  %v692 = vmul.f32 %v596, %v688
  %v693 = vmul.f32 %v597, %v689
  %v695 = vlaneseq
  %v696 = vshrl.u32 %v695, 7
  %v697 = vsub.s32 0, %v696
  %v698 = vrot.slane %v202, %v697
  %v700 = vmul.f32 %v690, %v698
  %v701 = vmul.f32 %v691, %v698
  %v702 = vmul.f32 %v692, %v698
  %v703 = vmul.f32 %v693, %v698
  %v705 = vlaneseq
  %v706 = vshrl.u32 %v705, 7
  %v707 = vsub.s32 0, %v706
  %v708 = vrot.slane %v203, %v707
  %v710 = vadd.f32 %v700, %v708
  %v711 = vadd.f32 %v701, %v708
  %v712 = vadd.f32 %v702, %v708
  %v713 = vadd.f32 %v703, %v708
  %v714 = vmin.f32 %v710, 30.0
  %v715 = vmin.f32 %v711, 30.0
  %v716 = vmin.f32 %v712, 30.0
  %v717 = vmin.f32 %v713, 30.0
  %v718 = vmul.f32 %v714, 1.442695
  %v719 = vpow.pop %v718
  %v720 = vmul.f32 %v715, 1.442695
  %v721 = vpow.pop %v720
  %v722 = vmul.f32 %v716, 1.442695
  %v723 = vpow.pop %v722
  %v724 = vmul.f32 %v717, 1.442695
  %v725 = vpow.pop %v724
  %v726 = vadd.f32 %v719, 1.0
  %v727 = vadd.f32 %v721, 1.0
  %v728 = vadd.f32 %v723, 1.0
  %v729 = vadd.f32 %v725, 1.0
  %v730 = vmul.f32 %v726, %v726
  %v731 = vmul.f32 %v727, %v727
  %v732 = vmul.f32 %v728, %v728
  %v733 = vmul.f32 %v729, %v729
  %v734 = vadd.f32 %v730, 1.0
  %v735 = vadd.f32 %v731, 1.0
  %v736 = vadd.f32 %v732, 1.0
  %v737 = vadd.f32 %v733, 1.0
  %v738 = vrcp.pop %v734
  %v739 = vrcp.pop %v735
  %v740 = vrcp.pop %v736
  %v741 = vrcp.pop %v737
  %v742 = vmul.f32 %v738, 2.0
  %v743 = vmul.f32 %v739, 2.0
  %v744 = vmul.f32 %v740, 2.0
  %v745 = vmul.f32 %v741, 2.0
  %v746 = vsub.f32 1.0, %v742
  %v747 = vsub.f32 1.0, %v743
  %v748 = vsub.f32 1.0, %v744
  %v749 = vsub.f32 1.0, %v745
  %v750 = vmul.f32 %v710, %v746
  %v751 = vmul.f32 %v711, %v747
  %v752 = vmul.f32 %v712, %v748
  %v753 = vmul.f32 %v713, %v749
  %v756 = vrot.slane %v750, 6
  %v757 = vrot.slane %v751, 6
  %v758 = vsel %vm418, %v756, %v757
  %v761 = vsel %vm418, 0.0, %v756
  %v763 = vrot.slane %v761, 1
  %v764 = vrot.slane %v758, 1
  %v765 = vsel %vm68, %v763, %v764
  %v766 = vrot.slane %v757, 1
  %v767 = vsel %vm68, %v764, %v766
  %768 = vrot.lane.b32.xlu0 %v765, 16
  %v769 = vpop.permute.xlu0 %768
  %770 = vrot.lane.b32.xlu0 %v767, 16
  %v771 = vpop.permute.xlu0 %770
  %v774 = vrot.slane %v761, 2
  %v775 = vrot.slane %v758, 2
  %v776 = vsel %vm80, %v774, %v775
  %v777 = vrot.slane %v757, 2
  %v778 = vsel %vm80, %v775, %v777
  %779 = vrot.lane.b32.xlu0 %v776, 32
  %v780 = vpop.permute.xlu0 %779
  %781 = vrot.lane.b32.xlu0 %v778, 32
  %v782 = vpop.permute.xlu0 %781
  %v785 = vsel %vm208, %v761, %v769
  %v786 = vsel %vm208, %v758, %v771
  %vm787 = vcmask 261120
  %v788 = vsel %vm787, %v785, %v780
  %v789 = vsel %vm787, %v786, %v782
  %v792 = vrot.slane %v752, 6
  %v793 = vrot.slane %v753, 6
  %v794 = vsel %vm418, %v792, %v793
  %v797 = vsel %vm418, 0.0, %v792
  %v799 = vrot.slane %v797, 1
  %v800 = vrot.slane %v794, 1
  %v801 = vsel %vm68, %v799, %v800
  %v802 = vrot.slane %v793, 1
  %v803 = vsel %vm68, %v800, %v802
  %804 = vrot.lane.b32.xlu0 %v801, 16
  %v805 = vpop.permute.xlu0 %804
  %806 = vrot.lane.b32.xlu0 %v803, 16
  %v807 = vpop.permute.xlu0 %806
  %v810 = vrot.slane %v797, 2
  %v811 = vrot.slane %v794, 2
  %v812 = vsel %vm80, %v810, %v811
  %v813 = vrot.slane %v793, 2
  %v814 = vsel %vm80, %v811, %v813
  %815 = vrot.lane.b32.xlu0 %v812, 32
  %v816 = vpop.permute.xlu0 %815
  %817 = vrot.lane.b32.xlu0 %v814, 32
  %v818 = vpop.permute.xlu0 %817
  %v821 = vsel %vm208, %v797, %v805
  %v822 = vsel %vm208, %v794, %v807
  %v823 = vsel %vm787, %v821, %v816
  %v824 = vsel %vm787, %v822, %v818
  %v825 = vpack.c.bf16 %v789, %v788
  %v826 = vpack.c.bf16 %v824, %v823
  %v827 = vld [vmem:[%s5] sm:$0xf]
  %v828 = vld [vmem:[%s5 + $0x4] sm:$0xf]
  %v829 = vld [vmem:[%s5 + $0x8] sm:$0xf]
  %v830 = vld [vmem:[%s5 + $0xc] sm:$0xf]
  %v831 = vld [vmem:[%s5 + $0x10] sm:$0xf]
  %v832 = vld [vmem:[%s5 + $0x14] sm:$0xf]
  %v833 = vld [vmem:[%s6] sm:$0x1]
  %v835 = vlaneseq
  %v836 = vshrl.u32 %v835, 7
  %v837 = vsub.s32 0, %v836
  %v838 = vrot.slane %v833, %v837
  %v846 = vunpack.c.l.b16 %v827
  %v847 = vunpack.c.l.b16 %v828
  %v848 = vunpack.c.l.b16 %v829
  %v849 = vunpack.c.l.b16 %v830
  %v850 = vunpack.c.l.b16 %v831
  %v851 = vunpack.c.l.b16 %v832
  %v852 = vpack.c.b16 %v847, %v846
  %v853 = vpack.c.b16 %v849, %v848
  %v854 = vpack.c.b16 %v851, %v850
  %vm858 = vcmask 392192
  %v860 = vsel %vm858, %v825, 0
  %v863 = vsel %vm858, %v826, 0
  %865 = vmatprep.subr.bf16.mxu0 0
  %866 = vmatpush1.bf16.msra.mxu0 0
  %867 = vmatprep.subr.bf16.mxu0 0
  %868 = vmatpush1.bf16.msra.mxu0 0
  %869 = vmatprep.subr.bf16.mxu0 0
  %870 = vmatpush1.bf16.msra.mxu0 0
  %871 = vmatprep.subr.bf16.mxu0 0
  %872 = vmatpush1.bf16.msra.mxu0 0
  %873 = vmatprep.subr.bf16.mxu0 0
  %874 = vmatpush1.bf16.msra.mxu0 0
  %875 = vmatprep.subr.bf16.mxu0 0
  %876 = vmatpush1.bf16.msra.mxu0 %v854
  %877 = vmatprep.subr.bf16.mxu0 0
  %878 = vmatpush1.bf16.msra.mxu0 %v853
  %879 = vmatprep.subr.bf16.mxu0 0
  %880 = vmatpush1.bf16.msra.mxu0 %v852
  %881 = vmatprep.subr.bf16.mxu0 0
  %882 = vmatpush2.bf16.msra.mxu0 0
  %883 = vmatprep.subr.bf16.mxu0 0
  %884 = vmatpush2.bf16.msra.mxu0 0
  %885 = vmatprep.subr.bf16.mxu0 0
  %886 = vmatpush2.bf16.msra.mxu0 0
  %887 = vmatprep.subr.bf16.mxu0 0
  %888 = vmatpush2.bf16.msra.mxu0 0
  %889 = vmatprep.subr.bf16.mxu0 0
  %890 = vmatpush2.bf16.msra.mxu0 0
  %891 = vmatprep.subr.bf16.mxu0 0
  %892 = vmatpush2.bf16.msra.mxu0 0
  %893 = vmatprep.subr.bf16.mxu0 0
  %894 = vmatpush2.bf16.msra.mxu0 0
  %895 = vmatprep.subr.bf16.mxu0 0
  %896 = vmatpush2.bf16.msra.mxu0 0
  %897 = vmatprep.mubr.bf16.mxu0 0
  %898 = vmatmul.mubr.bf16.gmra.mxu0 %v860
  %v899 = vpop.f32.mrf.mxu0
  %v900 = vadd.f32 %v838, %v899
  %v901 = vpop.f32.mrf.mxu0
  %v902 = vpop.f32.mrf.mxu0
  %v903 = vadd.f32 %v838, %v902
  %v904 = vpop.f32.mrf.mxu0
  %905 = vmatprep.mubr.bf16.mxu0 0
  %906 = vmatmul.mubr.bf16.gmra.mxu0 %v863
  %v907 = vpop.f32.mrf.mxu0
  %v908 = vadd.f32 %v838, %v907
  %v909 = vpop.f32.mrf.mxu0
  %v910 = vpop.f32.mrf.mxu0
  %v911 = vadd.f32 %v838, %v910
  %v912 = vpop.f32.mrf.mxu0
  %913 = vdwg.mxu0
  %v914 = vld [vmem:[%s7] sm:$0x1]
  %v915 = vld [vmem:[%s8] sm:$0x1]
  %v916 = vmul.f32 %v900, %v900
  %v917 = vmul.f32 %v903, %v903
  %v918 = vmul.f32 %v908, %v908
  %v919 = vmul.f32 %v911, %v911
  %v921 = vsel %vm208, %v900, 0
  %v924 = vsel %vm208, %v903, 0
  %v927 = vsel %vm208, %v908, 0
  %v930 = vsel %vm208, %v911, 0
  %v933 = vsel %vm208, %v916, 0
  %v936 = vsel %vm208, %v917, 0
  %v939 = vsel %vm208, %v918, 0
  %v942 = vsel %vm208, %v919, 0
  %944 = vmatprep.subr.mxu0 0.0
  %945 = vmatpush1.msra.mxu0 0.0
  %946 = vmatprep.subr.mxu0 0.0
  %947 = vmatpush1.msra.mxu0 0.0
  %948 = vmatprep.subr.mxu0 0.0
  %949 = vmatpush1.msra.mxu0 0.0
  %950 = vmatprep.subr.mxu0 0.0
  %951 = vmatpush1.msra.mxu0 0.0
  %952 = vmatprep.subr.mxu0 0.0
  %953 = vmatpush1.msra.mxu0 0.0
  %954 = vmatprep.subr.mxu0 0.0
  %955 = vmatpush1.msra.mxu0 0.0
  %956 = vmatprep.subr.mxu0 0.0
  %957 = vmatpush1.msra.mxu0 0.0
  %958 = vmatprep.subr.mxu0 0.0
  %959 = vmatpush1.msra.mxu0 0.0
  %960 = vmatprep.subr.mxu0 0.0
  %961 = vmatpush1.msra.mxu0 0.0
  %962 = vmatprep.subr.mxu0 0.0
  %963 = vmatpush1.msra.mxu0 0.0
  %964 = vmatprep.subr.mxu0 0.0
  %965 = vmatpush1.msra.mxu0 0.0
  %966 = vmatprep.subr.mxu0 0.0
  %967 = vmatpush1.msra.mxu0 0.0
  %968 = vmatprep.subr.mxu0 0.0
  %969 = vmatpush1.msra.mxu0 0.0
  %970 = vmatprep.subr.mxu0 0.0
  %971 = vmatpush1.msra.mxu0 0.0
  %972 = vmatprep.subr.mxu0 0.0
  %973 = vmatpush1.msra.mxu0 %v52
  %974 = vmatprep.subr.mxu0 0.0
  %975 = vmatpush1.msra.mxu0 %v51
  %976 = vmatprep.subr.mxu0 0.0
  %977 = vmatpush2.msra.mxu0 0.0
  %978 = vmatprep.subr.mxu0 0.0
  %979 = vmatpush2.msra.mxu0 0.0
  %980 = vmatprep.subr.mxu0 0.0
  %981 = vmatpush2.msra.mxu0 0.0
  %982 = vmatprep.subr.mxu0 0.0
  %983 = vmatpush2.msra.mxu0 0.0
  %984 = vmatprep.subr.mxu0 0.0
  %985 = vmatpush2.msra.mxu0 0.0
  %986 = vmatprep.subr.mxu0 0.0
  %987 = vmatpush2.msra.mxu0 0.0
  %988 = vmatprep.subr.mxu0 0.0
  %989 = vmatpush2.msra.mxu0 0.0
  %990 = vmatprep.subr.mxu0 0.0
  %991 = vmatpush2.msra.mxu0 0.0
  %992 = vmatprep.subr.mxu0 0.0
  %993 = vmatpush2.msra.mxu0 0.0
  %994 = vmatprep.subr.mxu0 0.0
  %995 = vmatpush2.msra.mxu0 0.0
  %996 = vmatprep.subr.mxu0 0.0
  %997 = vmatpush2.msra.mxu0 0.0
  %998 = vmatprep.subr.mxu0 0.0
  %999 = vmatpush2.msra.mxu0 0.0
  %1000 = vmatprep.subr.mxu0 0.0
  %1001 = vmatpush2.msra.mxu0 0.0
  %1002 = vmatprep.subr.mxu0 0.0
  %1003 = vmatpush2.msra.mxu0 0.0
  %1004 = vmatprep.subr.mxu0 0.0
  %1005 = vmatpush2.msra.mxu0 0.0
  %1006 = vmatprep.subr.mxu0 0.0
  %1007 = vmatpush2.msra.mxu0 0.0
  %1008 = vmatprep.mubr.f32.mxu0 0.0
  %1009 = vmatmul.mubr.f32.gmra.mxu0 %v921
  %v1010 = vpop.f32.mrf.mxu0
  %v1011 = vadd.f32 0.0, %v1010
  %v1012 = vpop.f32.mrf.mxu0
  %1013 = vmatprep.mubr.f32.mxu0 0.0
  %1014 = vmatmul.mubr.f32.gmra.mxu0 %v924
  %v1015 = vpop.f32.mrf.mxu0
  %v1016 = vadd.f32 0.0, %v1015
  %v1017 = vpop.f32.mrf.mxu0
  %1018 = vmatprep.mubr.f32.mxu0 0.0
  %1019 = vmatmul.mubr.f32.gmra.mxu0 %v927
  %v1020 = vpop.f32.mrf.mxu0
  %v1021 = vadd.f32 0.0, %v1020
  %v1022 = vpop.f32.mrf.mxu0
  %1023 = vmatprep.mubr.f32.mxu0 0.0
  %1024 = vmatmul.mubr.f32.gmra.mxu0 %v930
  %v1025 = vpop.f32.mrf.mxu0
  %v1026 = vadd.f32 0.0, %v1025
  %v1027 = vpop.f32.mrf.mxu0
  %1028 = vmatprep.mubr.f32.mxu0 0.0
  %1029 = vmatmul.mubr.f32.gmra.mxu0 %v933
  %v1030 = vpop.f32.mrf.mxu0
  %v1031 = vadd.f32 0.0, %v1030
  %v1032 = vpop.f32.mrf.mxu0
  %1033 = vmatprep.mubr.f32.mxu0 0.0
  %1034 = vmatmul.mubr.f32.gmra.mxu0 %v936
  %v1035 = vpop.f32.mrf.mxu0
  %v1036 = vadd.f32 0.0, %v1035
  %v1037 = vpop.f32.mrf.mxu0
  %1038 = vmatprep.mubr.f32.mxu0 0.0
  %1039 = vmatmul.mubr.f32.gmra.mxu0 %v939
  %v1040 = vpop.f32.mrf.mxu0
  %v1041 = vadd.f32 0.0, %v1040
  %v1042 = vpop.f32.mrf.mxu0
  %1043 = vmatprep.mubr.f32.mxu0 0.0
  %1044 = vmatmul.mubr.f32.gmra.mxu0 %v942
  %v1045 = vpop.f32.mrf.mxu0
  %v1046 = vadd.f32 0.0, %v1045
  %v1047 = vpop.f32.mrf.mxu0
  %1048 = vdwg.mxu0
  %1049 = vmatprep.subr.mxu0 0.0
  %1050 = vmatpush1.msra.mxu0 0.0
  %1051 = vmatprep.subr.mxu0 0.0
  %1052 = vmatpush1.msra.mxu0 0.0
  %1053 = vmatprep.subr.mxu0 0.0
  %1054 = vmatpush1.msra.mxu0 0.0
  %1055 = vmatprep.subr.mxu0 0.0
  %1056 = vmatpush1.msra.mxu0 0.0
  %1057 = vmatprep.subr.mxu0 0.0
  %1058 = vmatpush1.msra.mxu0 0.0
  %1059 = vmatprep.subr.mxu0 0.0
  %1060 = vmatpush1.msra.mxu0 0.0
  %1061 = vmatprep.subr.mxu0 0.0
  %1062 = vmatpush1.msra.mxu0 0.0
  %1063 = vmatprep.subr.mxu0 0.0
  %1064 = vmatpush1.msra.mxu0 0.0
  %1065 = vmatprep.subr.mxu0 0.0
  %1066 = vmatpush1.msra.mxu0 %v1046
  %1067 = vmatprep.subr.mxu0 0.0
  %1068 = vmatpush1.msra.mxu0 %v1041
  %1069 = vmatprep.subr.mxu0 0.0
  %1070 = vmatpush1.msra.mxu0 %v1036
  %1071 = vmatprep.subr.mxu0 0.0
  %1072 = vmatpush1.msra.mxu0 %v1031
  %1073 = vmatprep.subr.mxu0 0.0
  %1074 = vmatpush1.msra.mxu0 %v1026
  %1075 = vmatprep.subr.mxu0 0.0
  %1076 = vmatpush1.msra.mxu0 %v1021
  %1077 = vmatprep.subr.mxu0 0.0
  %1078 = vmatpush1.msra.mxu0 %v1016
  %1079 = vmatprep.subr.mxu0 0.0
  %1080 = vmatpush1.msra.mxu0 %v1011
  %1081 = vmatprep.subr.mxu0 0.0
  %1082 = vmatpush2.msra.mxu0 0.0
  %1083 = vmatprep.subr.mxu0 0.0
  %1084 = vmatpush2.msra.mxu0 0.0
  %1085 = vmatprep.subr.mxu0 0.0
  %1086 = vmatpush2.msra.mxu0 0.0
  %1087 = vmatprep.subr.mxu0 0.0
  %1088 = vmatpush2.msra.mxu0 0.0
  %1089 = vmatprep.subr.mxu0 0.0
  %1090 = vmatpush2.msra.mxu0 0.0
  %1091 = vmatprep.subr.mxu0 0.0
  %1092 = vmatpush2.msra.mxu0 0.0
  %1093 = vmatprep.subr.mxu0 0.0
  %1094 = vmatpush2.msra.mxu0 0.0
  %1095 = vmatprep.subr.mxu0 0.0
  %1096 = vmatpush2.msra.mxu0 0.0
  %1097 = vmatprep.subr.mxu0 0.0
  %1098 = vmatpush2.msra.mxu0 0.0
  %1099 = vmatprep.subr.mxu0 0.0
  %1100 = vmatpush2.msra.mxu0 0.0
  %1101 = vmatprep.subr.mxu0 0.0
  %1102 = vmatpush2.msra.mxu0 0.0
  %1103 = vmatprep.subr.mxu0 0.0
  %1104 = vmatpush2.msra.mxu0 0.0
  %1105 = vmatprep.subr.mxu0 0.0
  %1106 = vmatpush2.msra.mxu0 0.0
  %1107 = vmatprep.subr.mxu0 0.0
  %1108 = vmatpush2.msra.mxu0 0.0
  %1109 = vmatprep.subr.mxu0 0.0
  %1110 = vmatpush2.msra.mxu0 0.0
  %1111 = vmatprep.subr.mxu0 0.0
  %1112 = vmatpush2.msra.mxu0 0.0
  %1113 = vmatprep.mubr.f32.mxu0 0.0
  %1114 = vmatmul.mubr.f32.gmra.mxu0 %v340
  %v1115 = vpop.f32.mrf.mxu0
  %v1116 = vadd.f32 0.0, %v1115
  %v1117 = vpop.f32.mrf.mxu0
  %1118 = vdwg.mxu0
  %v1119 = vmul.f32 %v1116, 0.03125
  %v1120 = vmul.f32 %v1119, %v1119
  %v1122 = vrot.slane %v1120, 6
  %v1124 = vsub.f32 %v1119, %v1122
  %v1125 = vsel %vm418, %v1119, %v1124
  %v1127 = vsel %vm95, %v1125, 0
  %1129 = vmatprep.subr.mxu0 0.0
  %1130 = vmatpush1.msra.mxu0 0.0
  %1131 = vmatprep.subr.mxu0 0.0
  %1132 = vmatpush1.msra.mxu0 0.0
  %1133 = vmatprep.subr.mxu0 0.0
  %1134 = vmatpush1.msra.mxu0 0.0
  %1135 = vmatprep.subr.mxu0 0.0
  %1136 = vmatpush1.msra.mxu0 0.0
  %1137 = vmatprep.subr.mxu0 0.0
  %1138 = vmatpush1.msra.mxu0 0.0
  %1139 = vmatprep.subr.mxu0 0.0
  %1140 = vmatpush1.msra.mxu0 0.0
  %1141 = vmatprep.subr.mxu0 0.0
  %1142 = vmatpush1.msra.mxu0 0.0
  %1143 = vmatprep.subr.mxu0 0.0
  %1144 = vmatpush1.msra.mxu0 0.0
  %1145 = vmatprep.subr.mxu0 0.0
  %1146 = vmatpush1.msra.mxu0 0.0
  %1147 = vmatprep.subr.mxu0 0.0
  %1148 = vmatpush1.msra.mxu0 0.0
  %1149 = vmatprep.subr.mxu0 0.0
  %1150 = vmatpush1.msra.mxu0 0.0
  %1151 = vmatprep.subr.mxu0 0.0
  %1152 = vmatpush1.msra.mxu0 0.0
  %1153 = vmatprep.subr.mxu0 0.0
  %1154 = vmatpush1.msra.mxu0 0.0
  %1155 = vmatprep.subr.mxu0 0.0
  %1156 = vmatpush1.msra.mxu0 0.0
  %1157 = vmatprep.subr.mxu0 0.0
  %1158 = vmatpush1.msra.mxu0 0.0
  %1159 = vmatprep.subr.mxu0 0.0
  %1160 = vmatpush1.msra.mxu0 %v53
  %1161 = vmatprep.subr.mxu0 0.0
  %1162 = vmatpush2.msra.mxu0 0.0
  %1163 = vmatprep.subr.mxu0 0.0
  %1164 = vmatpush2.msra.mxu0 0.0
  %1165 = vmatprep.subr.mxu0 0.0
  %1166 = vmatpush2.msra.mxu0 0.0
  %1167 = vmatprep.subr.mxu0 0.0
  %1168 = vmatpush2.msra.mxu0 0.0
  %1169 = vmatprep.subr.mxu0 0.0
  %1170 = vmatpush2.msra.mxu0 0.0
  %1171 = vmatprep.subr.mxu0 0.0
  %1172 = vmatpush2.msra.mxu0 0.0
  %1173 = vmatprep.subr.mxu0 0.0
  %1174 = vmatpush2.msra.mxu0 0.0
  %1175 = vmatprep.subr.mxu0 0.0
  %1176 = vmatpush2.msra.mxu0 0.0
  %1177 = vmatprep.subr.mxu0 0.0
  %1178 = vmatpush2.msra.mxu0 0.0
  %1179 = vmatprep.subr.mxu0 0.0
  %1180 = vmatpush2.msra.mxu0 0.0
  %1181 = vmatprep.subr.mxu0 0.0
  %1182 = vmatpush2.msra.mxu0 0.0
  %1183 = vmatprep.subr.mxu0 0.0
  %1184 = vmatpush2.msra.mxu0 0.0
  %1185 = vmatprep.subr.mxu0 0.0
  %1186 = vmatpush2.msra.mxu0 0.0
  %1187 = vmatprep.subr.mxu0 0.0
  %1188 = vmatpush2.msra.mxu0 0.0
  %1189 = vmatprep.subr.mxu0 0.0
  %1190 = vmatpush2.msra.mxu0 0.0
  %1191 = vmatprep.subr.mxu0 0.0
  %1192 = vmatpush2.msra.mxu0 0.0
  %1193 = vmatprep.mubr.f32.mxu0 0.0
  %1194 = vmatmul.mubr.f32.gmra.mxu0 %v1127
  %v1195 = vpop.f32.mrf.mxu0
  %v1196 = vadd.f32 0.0, %v1195
  %v1197 = vpop.f32.mrf.mxu0
  %1198 = vdwg.mxu0
  %v1200 = vsel %vm418, %v1196, 0
  %1202 = vmatprep.subr.mxu0 0.0
  %1203 = vmatpush1.msra.mxu0 0.0
  %1204 = vmatprep.subr.mxu0 0.0
  %1205 = vmatpush1.msra.mxu0 0.0
  %1206 = vmatprep.subr.mxu0 0.0
  %1207 = vmatpush1.msra.mxu0 0.0
  %1208 = vmatprep.subr.mxu0 0.0
  %1209 = vmatpush1.msra.mxu0 0.0
  %1210 = vmatprep.subr.mxu0 0.0
  %1211 = vmatpush1.msra.mxu0 0.0
  %1212 = vmatprep.subr.mxu0 0.0
  %1213 = vmatpush1.msra.mxu0 0.0
  %1214 = vmatprep.subr.mxu0 0.0
  %1215 = vmatpush1.msra.mxu0 0.0
  %1216 = vmatprep.subr.mxu0 0.0
  %1217 = vmatpush1.msra.mxu0 0.0
  %1218 = vmatprep.subr.mxu0 0.0
  %1219 = vmatpush1.msra.mxu0 0.0
  %1220 = vmatprep.subr.mxu0 0.0
  %1221 = vmatpush1.msra.mxu0 0.0
  %1222 = vmatprep.subr.mxu0 0.0
  %1223 = vmatpush1.msra.mxu0 0.0
  %1224 = vmatprep.subr.mxu0 0.0
  %1225 = vmatpush1.msra.mxu0 0.0
  %1226 = vmatprep.subr.mxu0 0.0
  %1227 = vmatpush1.msra.mxu0 0.0
  %1228 = vmatprep.subr.mxu0 0.0
  %1229 = vmatpush1.msra.mxu0 0.0
  %1230 = vmatprep.subr.mxu0 0.0
  %1231 = vmatpush1.msra.mxu0 0.0
  %1232 = vmatprep.subr.mxu0 0.0
  %1233 = vmatpush1.msra.mxu0 %v1200
  %1234 = vmatprep.subr.mxu0 0.0
  %1235 = vmatpush2.msra.mxu0 0.0
  %1236 = vmatprep.subr.mxu0 0.0
  %1237 = vmatpush2.msra.mxu0 0.0
  %1238 = vmatprep.subr.mxu0 0.0
  %1239 = vmatpush2.msra.mxu0 0.0
  %1240 = vmatprep.subr.mxu0 0.0
  %1241 = vmatpush2.msra.mxu0 0.0
  %1242 = vmatprep.subr.mxu0 0.0
  %1243 = vmatpush2.msra.mxu0 0.0
  %1244 = vmatprep.subr.mxu0 0.0
  %1245 = vmatpush2.msra.mxu0 0.0
  %1246 = vmatprep.subr.mxu0 0.0
  %1247 = vmatpush2.msra.mxu0 0.0
  %1248 = vmatprep.subr.mxu0 0.0
  %1249 = vmatpush2.msra.mxu0 0.0
  %1250 = vmatprep.subr.mxu0 0.0
  %1251 = vmatpush2.msra.mxu0 0.0
  %1252 = vmatprep.subr.mxu0 0.0
  %1253 = vmatpush2.msra.mxu0 0.0
  %1254 = vmatprep.subr.mxu0 0.0
  %1255 = vmatpush2.msra.mxu0 0.0
  %1256 = vmatprep.subr.mxu0 0.0
  %1257 = vmatpush2.msra.mxu0 0.0
  %1258 = vmatprep.subr.mxu0 0.0
  %1259 = vmatpush2.msra.mxu0 0.0
  %1260 = vmatprep.subr.mxu0 0.0
  %1261 = vmatpush2.msra.mxu0 0.0
  %1262 = vmatprep.subr.mxu0 0.0
  %1263 = vmatpush2.msra.mxu0 0.0
  %1264 = vmatprep.subr.mxu0 0.0
  %1265 = vmatpush2.msra.mxu0 0.0
  %1266 = vmatprep.mubr.f32.mxu0 0.0
  %1267 = vmatmul.mubr.f32.gmra.mxu0 %v495
  %v1268 = vpop.f32.mrf.mxu0
  %v1269 = vadd.f32 0.0, %v1268
  %v1270 = vpop.f32.mrf.mxu0
  %1271 = vmatprep.mubr.f32.mxu0 0.0
  %1272 = vmatmul.mubr.f32.gmra.mxu0 %v498
  %v1273 = vpop.f32.mrf.mxu0
  %v1274 = vadd.f32 0.0, %v1273
  %v1275 = vpop.f32.mrf.mxu0
  %1276 = vmatprep.mubr.f32.mxu0 0.0
  %1277 = vmatmul.mubr.f32.gmra.mxu0 %v501
  %v1278 = vpop.f32.mrf.mxu0
  %v1279 = vadd.f32 0.0, %v1278
  %v1280 = vpop.f32.mrf.mxu0
  %1281 = vmatprep.mubr.f32.mxu0 0.0
  %1282 = vmatmul.mubr.f32.gmra.mxu0 %v504
  %v1283 = vpop.f32.mrf.mxu0
  %v1284 = vadd.f32 0.0, %v1283
  %v1285 = vpop.f32.mrf.mxu0
  %1286 = vdwg.mxu0
  %v1287 = vsub.f32 %v900, %v1269
  %v1288 = vsub.f32 %v903, %v1274
  %v1289 = vsub.f32 %v908, %v1279
  %v1290 = vsub.f32 %v911, %v1284
  %v1291 = vrot.slane %v1196, 2
  %v1292 = vsel %vm418, %v1291, 0
  %1294 = vmatprep.subr.mxu0 0.0
  %1295 = vmatpush1.msra.mxu0 0.0
  %1296 = vmatprep.subr.mxu0 0.0
  %1297 = vmatpush1.msra.mxu0 0.0
  %1298 = vmatprep.subr.mxu0 0.0
  %1299 = vmatpush1.msra.mxu0 0.0
  %1300 = vmatprep.subr.mxu0 0.0
  %1301 = vmatpush1.msra.mxu0 0.0
  %1302 = vmatprep.subr.mxu0 0.0
  %1303 = vmatpush1.msra.mxu0 0.0
  %1304 = vmatprep.subr.mxu0 0.0
  %1305 = vmatpush1.msra.mxu0 0.0
  %1306 = vmatprep.subr.mxu0 0.0
  %1307 = vmatpush1.msra.mxu0 0.0
  %1308 = vmatprep.subr.mxu0 0.0
  %1309 = vmatpush1.msra.mxu0 0.0
  %1310 = vmatprep.subr.mxu0 0.0
  %1311 = vmatpush1.msra.mxu0 0.0
  %1312 = vmatprep.subr.mxu0 0.0
  %1313 = vmatpush1.msra.mxu0 0.0
  %1314 = vmatprep.subr.mxu0 0.0
  %1315 = vmatpush1.msra.mxu0 0.0
  %1316 = vmatprep.subr.mxu0 0.0
  %1317 = vmatpush1.msra.mxu0 0.0
  %1318 = vmatprep.subr.mxu0 0.0
  %1319 = vmatpush1.msra.mxu0 0.0
  %1320 = vmatprep.subr.mxu0 0.0
  %1321 = vmatpush1.msra.mxu0 0.0
  %1322 = vmatprep.subr.mxu0 0.0
  %1323 = vmatpush1.msra.mxu0 0.0
  %1324 = vmatprep.subr.mxu0 0.0
  %1325 = vmatpush1.msra.mxu0 %v1292
  %1326 = vmatprep.subr.mxu0 0.0
  %1327 = vmatpush2.msra.mxu0 0.0
  %1328 = vmatprep.subr.mxu0 0.0
  %1329 = vmatpush2.msra.mxu0 0.0
  %1330 = vmatprep.subr.mxu0 0.0
  %1331 = vmatpush2.msra.mxu0 0.0
  %1332 = vmatprep.subr.mxu0 0.0
  %1333 = vmatpush2.msra.mxu0 0.0
  %1334 = vmatprep.subr.mxu0 0.0
  %1335 = vmatpush2.msra.mxu0 0.0
  %1336 = vmatprep.subr.mxu0 0.0
  %1337 = vmatpush2.msra.mxu0 0.0
  %1338 = vmatprep.subr.mxu0 0.0
  %1339 = vmatpush2.msra.mxu0 0.0
  %1340 = vmatprep.subr.mxu0 0.0
  %1341 = vmatpush2.msra.mxu0 0.0
  %1342 = vmatprep.subr.mxu0 0.0
  %1343 = vmatpush2.msra.mxu0 0.0
  %1344 = vmatprep.subr.mxu0 0.0
  %1345 = vmatpush2.msra.mxu0 0.0
  %1346 = vmatprep.subr.mxu0 0.0
  %1347 = vmatpush2.msra.mxu0 0.0
  %1348 = vmatprep.subr.mxu0 0.0
  %1349 = vmatpush2.msra.mxu0 0.0
  %1350 = vmatprep.subr.mxu0 0.0
  %1351 = vmatpush2.msra.mxu0 0.0
  %1352 = vmatprep.subr.mxu0 0.0
  %1353 = vmatpush2.msra.mxu0 0.0
  %1354 = vmatprep.subr.mxu0 0.0
  %1355 = vmatpush2.msra.mxu0 0.0
  %1356 = vmatprep.subr.mxu0 0.0
  %1357 = vmatpush2.msra.mxu0 0.0
  %1358 = vmatprep.mubr.f32.mxu0 0.0
  %1359 = vmatmul.mubr.f32.gmra.mxu0 %v495
  %v1360 = vpop.f32.mrf.mxu0
  %v1361 = vadd.f32 1e-05, %v1360
  %v1362 = vpop.f32.mrf.mxu0
  %1363 = vmatprep.mubr.f32.mxu0 0.0
  %1364 = vmatmul.mubr.f32.gmra.mxu0 %v498
  %v1365 = vpop.f32.mrf.mxu0
  %v1366 = vadd.f32 1e-05, %v1365
  %v1367 = vpop.f32.mrf.mxu0
  %1368 = vmatprep.mubr.f32.mxu0 0.0
  %1369 = vmatmul.mubr.f32.gmra.mxu0 %v501
  %v1370 = vpop.f32.mrf.mxu0
  %v1371 = vadd.f32 1e-05, %v1370
  %v1372 = vpop.f32.mrf.mxu0
  %1373 = vmatprep.mubr.f32.mxu0 0.0
  %1374 = vmatmul.mubr.f32.gmra.mxu0 %v504
  %v1375 = vpop.f32.mrf.mxu0
  %v1376 = vadd.f32 1e-05, %v1375
  %v1377 = vpop.f32.mrf.mxu0
  %1378 = vdwg.mxu0
  %v1379 = vrsqrt.pop %v1361
  %v1380 = vrsqrt.pop %v1366
  %v1381 = vrsqrt.pop %v1371
  %v1382 = vrsqrt.pop %v1376
  %v1383 = vmul.f32 %v1287, %v1379
  %v1384 = vmul.f32 %v1288, %v1380
  %v1385 = vmul.f32 %v1289, %v1381
  %v1386 = vmul.f32 %v1290, %v1382
  %v1388 = vlaneseq
  %v1389 = vshrl.u32 %v1388, 7
  %v1390 = vsub.s32 0, %v1389
  %v1391 = vrot.slane %v914, %v1390
  %v1393 = vmul.f32 %v1383, %v1391
  %v1394 = vmul.f32 %v1384, %v1391
  %v1395 = vmul.f32 %v1385, %v1391
  %v1396 = vmul.f32 %v1386, %v1391
  %v1398 = vlaneseq
  %v1399 = vshrl.u32 %v1398, 7
  %v1400 = vsub.s32 0, %v1399
  %v1401 = vrot.slane %v915, %v1400
  %v1403 = vadd.f32 %v1393, %v1401
  %v1404 = vadd.f32 %v1394, %v1401
  %v1405 = vadd.f32 %v1395, %v1401
  %v1406 = vadd.f32 %v1396, %v1401
  %v1407 = vmin.f32 %v1403, 30.0
  %v1408 = vmin.f32 %v1404, 30.0
  %v1409 = vmin.f32 %v1405, 30.0
  %v1410 = vmin.f32 %v1406, 30.0
  %v1411 = vmul.f32 %v1407, 1.442695
  %v1412 = vpow.pop %v1411
  %v1413 = vmul.f32 %v1408, 1.442695
  %v1414 = vpow.pop %v1413
  %v1415 = vmul.f32 %v1409, 1.442695
  %v1416 = vpow.pop %v1415
  %v1417 = vmul.f32 %v1410, 1.442695
  %v1418 = vpow.pop %v1417
  %v1419 = vadd.f32 %v1412, 1.0
  %v1420 = vadd.f32 %v1414, 1.0
  %v1421 = vadd.f32 %v1416, 1.0
  %v1422 = vadd.f32 %v1418, 1.0
  %v1423 = vmul.f32 %v1419, %v1419
  %v1424 = vmul.f32 %v1420, %v1420
  %v1425 = vmul.f32 %v1421, %v1421
  %v1426 = vmul.f32 %v1422, %v1422
  %v1427 = vadd.f32 %v1423, 1.0
  %v1428 = vadd.f32 %v1424, 1.0
  %v1429 = vadd.f32 %v1425, 1.0
  %v1430 = vadd.f32 %v1426, 1.0
  %v1431 = vrcp.pop %v1427
  %v1432 = vrcp.pop %v1428
  %v1433 = vrcp.pop %v1429
  %v1434 = vrcp.pop %v1430
  %v1435 = vmul.f32 %v1431, 2.0
  %v1436 = vmul.f32 %v1432, 2.0
  %v1437 = vmul.f32 %v1433, 2.0
  %v1438 = vmul.f32 %v1434, 2.0
  %v1439 = vsub.f32 1.0, %v1435
  %v1440 = vsub.f32 1.0, %v1436
  %v1441 = vsub.f32 1.0, %v1437
  %v1442 = vsub.f32 1.0, %v1438
  %v1443 = vmul.f32 %v1403, %v1439
  %v1444 = vmul.f32 %v1404, %v1440
  %v1445 = vmul.f32 %v1405, %v1441
  %v1446 = vmul.f32 %v1406, %v1442
  %v1447 = vld [vmem:[%s9] sm:$0xf]
  %v1448 = vld [vmem:[%s9 + $0x4] sm:$0x3]
  %v1449 = vld [vmem:[%s10] sm:$0x1]
  %v1451 = vlaneseq
  %v1452 = vshrl.u32 %v1451, 7
  %v1453 = vsub.s32 0, %v1452
  %v1454 = vrot.slane %v1449, %v1453
  %v1458 = vunpack.c.l.b16 %v1447
  %v1459 = vunpack.c.l.b16 %v1448
  %v1460 = vpack.c.b16 %v1459, %v1458
  %v1462 = vsel %vm80, %v1460, 0
  %1464 = vmatprep.subr.bf16.mxu0 0
  %1465 = vmatpush1.bf16.msra.mxu0 0
  %1466 = vmatprep.subr.bf16.mxu0 0
  %1467 = vmatpush1.bf16.msra.mxu0 0
  %1468 = vmatprep.subr.bf16.mxu0 0
  %1469 = vmatpush1.bf16.msra.mxu0 0
  %1470 = vmatprep.subr.bf16.mxu0 0
  %1471 = vmatpush1.bf16.msra.mxu0 0
  %1472 = vmatprep.subr.bf16.mxu0 0
  %1473 = vmatpush1.bf16.msra.mxu0 0
  %1474 = vmatprep.subr.bf16.mxu0 0
  %1475 = vmatpush1.bf16.msra.mxu0 0
  %1476 = vmatprep.subr.bf16.mxu0 0
  %1477 = vmatpush1.bf16.msra.mxu0 0
  %1478 = vmatprep.subr.bf16.mxu0 0
  %1479 = vmatpush1.bf16.msra.mxu0 %v1462
  %1480 = vmatprep.subr.bf16.mxu0 0
  %1481 = vmatpush2.bf16.msra.mxu0 0
  %1482 = vmatprep.subr.bf16.mxu0 0
  %1483 = vmatpush2.bf16.msra.mxu0 0
  %1484 = vmatprep.subr.bf16.mxu0 0
  %1485 = vmatpush2.bf16.msra.mxu0 0
  %1486 = vmatprep.subr.bf16.mxu0 0
  %1487 = vmatpush2.bf16.msra.mxu0 0
  %1488 = vmatprep.subr.bf16.mxu0 0
  %1489 = vmatpush2.bf16.msra.mxu0 0
  %1490 = vmatprep.subr.bf16.mxu0 0
  %1491 = vmatpush2.bf16.msra.mxu0 0
  %1492 = vmatprep.subr.bf16.mxu0 0
  %1493 = vmatpush2.bf16.msra.mxu0 0
  %1494 = vmatprep.subr.bf16.mxu0 0
  %1495 = vmatpush2.bf16.msra.mxu0 0
  %1496 = vmatprep.mubr.bf16.mxu0 0
  %1497 = vmatmul.mubr.bf16.gmra.mxu0 %v145
  %v1498 = vpop.f32.mrf.mxu0
  %v1499 = vadd.f32 %v1454, %v1498
  %v1500 = vpop.f32.mrf.mxu0
  %v1501 = vpop.f32.mrf.mxu0
  %v1502 = vadd.f32 %v1454, %v1501
  %v1503 = vpop.f32.mrf.mxu0
  %1504 = vmatprep.mubr.bf16.mxu0 0
  %1505 = vmatmul.mubr.bf16.gmra.mxu0 %v148
  %v1506 = vpop.f32.mrf.mxu0
  %v1507 = vadd.f32 %v1454, %v1506
  %v1508 = vpop.f32.mrf.mxu0
  %v1509 = vpop.f32.mrf.mxu0
  %v1510 = vadd.f32 %v1454, %v1509
  %v1511 = vpop.f32.mrf.mxu0
  %1512 = vdwg.mxu0
  %v1513 = vadd.f32 %v1443, %v1499
  %v1514 = vadd.f32 %v1444, %v1502
  %v1515 = vadd.f32 %v1445, %v1507
  %v1516 = vadd.f32 %v1446, %v1510
  %1517 = vst.msk [vmem:[%s15] sm:$0xff] %vm208, %v1513
  %1518 = vst.msk [vmem:[%s15 + $0x8] sm:$0xff] %vm208, %v1514
  %1519 = vst.msk [vmem:[%s15 + $0x10] sm:$0xff] %vm208, %v1515
  %1520 = vst.msk [vmem:[%s15 + $0x18] sm:$0xff] %vm208, %v1516
  // Predicated region
  $region62: #{tpu_custom_call.1} parent=0 // pred_check
    _
  $region63: #{tpu_custom_call.1} parent=0 // pred_check_branch
    %1522 = sbr.rel (0) target = $region65
  $region64: #{tpu_custom_call.1} parent=0 // pred_region
    _
  $region65: #{tpu_custom_call.1} parent=0 // pred_fallthru
    _
  // Predicated region
  $region66: #{tpu_custom_call.1} parent=0 // pred_check
    _
  $region67: #{tpu_custom_call.1} parent=0 // pred_check_branch
    %1524 = sbr.rel (0) target = $region69
  $region68: #{tpu_custom_call.1} parent=0 // pred_region
    _
  $region69: #{tpu_custom_call.1} parent=0 // pred_fallthru
    _

</llo_original>
